<compile_context>
chip_gen: v7x
topology: tpu7x:2x2x1
jax: 0.10.0
libtpu: 0.0.40
codegen_flags: <defaults>
</compile_context>

<pallas_src>
import functools

import jax
import jax.numpy as jnp
from jax.experimental import pallas as pl
from jax.experimental.pallas import tpu as pltpu


def _round_up(n, m):
    return ((n + m - 1) // m) * m


def ffnet_kernel(x_ref, w1_ref, b1_ref, w2_ref, b2_ref,
                 w3_ref, b3_ref, w4_ref, b4_ref, o_ref):
    # One batch tile (TB rows) per grid step; weights are resident across steps.
    x = x_ref[...].astype(jnp.bfloat16)                                  # (TB, D_in)

    h1 = jnp.dot(x, w1_ref[...], preferred_element_type=jnp.float32) + b1_ref[...]
    h1 = jnp.maximum(h1, 0.0).astype(jnp.bfloat16)                       # (TB, H1p)

    h2 = jnp.dot(h1, w2_ref[...], preferred_element_type=jnp.float32) + b2_ref[...]
    h2 = jnp.maximum(h2, 0.0).astype(jnp.bfloat16)                       # (TB, H2p)

    h3 = jnp.dot(h2, w3_ref[...], preferred_element_type=jnp.float32) + b3_ref[...]
    h3 = jnp.maximum(h3, 0.0)                                            # (TB, H3) f32

    # fc4 has out_features=1: do it as elementwise multiply + cross-lane sum
    # (VPU/XLU) instead of wasting an MXU pass on a single output column.
    w4 = w4_ref[...].astype(jnp.float32)                                 # (1, H3)
    z = jnp.sum(h3 * w4, axis=-1, keepdims=True) + b4_ref[...]           # (TB, 1)
    y = jnp.tanh(z)                                                      # (TB, 1)

    # Lane-dense store: write a full (TB, 128) slab (unmasked vst); the wrapper
    # slices out column 0.
    o_ref[...] = jnp.broadcast_to(y, o_ref.shape)


def ffnet_forward(x, params):
    """x: (B, 2, input_size) float32; params: (w1,b1,w2,b2,w3,b3,w4,b4)
    with weights stored as (in_features, out_features)."""
    B = x.shape[0]
    x2 = x.reshape(B, -1).astype(jnp.float32)        # torch.flatten(x, 1)
    D_in = x2.shape[1]

    w1, b1, w2, b2, w3, b3, w4, b4 = params
    H1, H2, H3 = w1.shape[1], w2.shape[1], w3.shape[1]
    # Pad hidden dims to MXU granularity (zero pads => numerically identical).
    H1p, H2p, H3p = _round_up(H1, 256), _round_up(H2, 256), _round_up(H3, 256)

    wdt = jnp.bfloat16
    w1p = jnp.pad(w1, ((0, 0), (0, H1p - H1))).astype(wdt)               # (D_in, H1p)
    b1p = jnp.pad(b1, ((0, 0), (0, H1p - H1))).astype(jnp.float32)       # (1, H1p)
    w2p = jnp.pad(w2, ((0, H1p - H1), (0, H2p - H2))).astype(wdt)        # (H1p, H2p)
    b2p = jnp.pad(b2, ((0, 0), (0, H2p - H2))).astype(jnp.float32)       # (1, H2p)
    w3p = jnp.pad(w3, ((0, H2p - H2), (0, H3p - H3))).astype(wdt)        # (H2p, H3p)
    b3p = jnp.pad(b3, ((0, 0), (0, H3p - H3))).astype(jnp.float32)       # (1, H3p)
    w4r = jnp.pad(w4.T, ((0, 0), (0, H3p - H3))).astype(wdt)             # (1, H3p)
    b4f = b4.astype(jnp.float32)                                         # (1, 1)

    # Batch tiling: TB is a multiple of 8 (sublane), up to 256 rows per step.
    TB = min(256, _round_up(B, 8))
    B_pad = _round_up(B, TB)
    if B_pad != B:
        x2 = jnp.pad(x2, ((0, B_pad - B), (0, 0)))
    G = B_pad // TB

    weight_bytes = 2 * (w1p.size + w2p.size + w3p.size + w4r.size) \
        + 4 * (b1p.size + b2p.size + b3p.size + b4f.size)
    cost = pl.CostEstimate(
        flops=2 * B_pad * (D_in * H1p + H1p * H2p + H2p * H3p + H3p),
        transcendentals=B_pad,
        bytes_accessed=int(weight_bytes + 4 * B_pad * D_in + 4 * B_pad * 128),
    )

    out = pl.pallas_call(
        ffnet_kernel,
        out_shape=jax.ShapeDtypeStruct((B_pad, 128), jnp.float32),
        grid=(G,),
        in_specs=[
            pl.BlockSpec((TB, D_in), lambda i: (i, 0)),      # x: tiled over batch
            pl.BlockSpec((D_in, H1p), lambda i: (0, 0)),     # weights/biases resident
            pl.BlockSpec((1, H1p), lambda i: (0, 0)),
            pl.BlockSpec((H1p, H2p), lambda i: (0, 0)),
            pl.BlockSpec((1, H2p), lambda i: (0, 0)),
            pl.BlockSpec((H2p, H3p), lambda i: (0, 0)),
            pl.BlockSpec((1, H3p), lambda i: (0, 0)),
            pl.BlockSpec((1, H3p), lambda i: (0, 0)),        # w4 as a (1, H3p) row
            pl.BlockSpec((1, 1), lambda i: (0, 0)),          # b4 scalar
        ],
        out_specs=pl.BlockSpec((TB, 128), lambda i: (i, 0)),
        compiler_params=pltpu.CompilerParams(
            dimension_semantics=("parallel",)),
        cost_estimate=cost,
    )(x2, w1p, b1p, w2p, b2p, w3p, b3p, w4r, b4f)

    return out[:B, 0:1]                                       # (B, 1)


def init_params(key, input_size):
    """Deterministic init mimicking PyTorch's default Linear init
    (uniform(-1/sqrt(fan_in), 1/sqrt(fan_in))). Weights stored as (in, out)."""
    dims = [(input_size * 2, 400), (400, 800), (800, 256), (256, 1)]
    params = []
    for (fan_in, fan_out) in dims:
        key, kw, kb = jax.random.split(key, 3)
        bound = 1.0 / (fan_in ** 0.5)
        w = jax.random.uniform(kw, (fan_in, fan_out), jnp.float32, -bound, bound)
        b = jax.random.uniform(kb, (1, fan_out), jnp.float32, -bound, bound)
        params += [w, b]
    return tuple(params)


def _reference_forward(x, params):
    """Pure-JAX f32 reference (matches the PyTorch module)."""
    w1, b1, w2, b2, w3, b3, w4, b4 = params
    h = x.reshape(x.shape[0], -1)
    h = jnp.maximum(h @ w1 + b1, 0.0)
    h = jnp.maximum(h @ w2 + b2, 0.0)
    h = jnp.maximum(h @ w3 + b3, 0.0)
    return jnp.tanh(h @ w4 + b4)


if __name__ == "__main__":
    input_size = 16
    batch = 8

    key = jax.random.PRNGKey(0)
    key, kx = jax.random.split(key)
    x = jax.random.normal(kx, (batch, 2, input_size), jnp.float32)

    params = init_params(key, input_size)

    out = ffnet_forward(x, params)
    out = jax.block_until_ready(out)

    assert out.shape == (batch, 1)
    assert bool(jnp.all(jnp.abs(out) <= 1.0))          # tanh range sanity check

    # Loose tolerance: kernel streams weights/activations in bf16 (f32 accumulate).
    ref = _reference_forward(x, params)
    assert bool(jnp.all(jnp.abs(out - ref) < 5e-2)), "mismatch vs f32 reference"

    print("KERNEL_OK")
</pallas_src>

<mosaic_0001>
module attributes {stable_mosaic.version = 11 : i64} {
  func.func @ffnet_kernel(%arg0: i32, %arg1: memref<8x32xf32, #tpu.memory_space<vmem>>, %arg2: memref<32x512xbf16, #tpu.memory_space<vmem>>, %arg3: memref<1x512xf32, #tpu.memory_space<vmem>>, %arg4: memref<512x1024xbf16, #tpu.memory_space<vmem>>, %arg5: memref<1x1024xf32, #tpu.memory_space<vmem>>, %arg6: memref<1024x256xbf16, #tpu.memory_space<vmem>>, %arg7: memref<1x256xf32, #tpu.memory_space<vmem>>, %arg8: memref<1x256xbf16, #tpu.memory_space<vmem>>, %arg9: memref<1x1xf32, #tpu.memory_space<vmem>>, %arg10: memref<8x128xf32, #tpu.memory_space<vmem>>) attributes {dimension_semantics = [#tpu.dimension_semantics<parallel>], iteration_bounds = array<i64: 1>, scalar_prefetch = 0 : i64, scratch_operands = 0 : i64, tpu.core_type = #tpu.core_type<tc>, window_params = [{transform_indices = @transform_0, window_bounds = array<i64: 8, 32>}, {pipeline_mode = #tpu.pipeline_mode<synchronous>, transform_indices = @transform_1, window_bounds = array<i64: 32, 512>}, {pipeline_mode = #tpu.pipeline_mode<synchronous>, transform_indices = @transform_2, window_bounds = array<i64: 1, 512>}, {pipeline_mode = #tpu.pipeline_mode<synchronous>, transform_indices = @transform_3, window_bounds = array<i64: 512, 1024>}, {pipeline_mode = #tpu.pipeline_mode<synchronous>, transform_indices = @transform_4, window_bounds = array<i64: 1, 1024>}, {pipeline_mode = #tpu.pipeline_mode<synchronous>, transform_indices = @transform_5, window_bounds = array<i64: 1024, 256>}, {pipeline_mode = #tpu.pipeline_mode<synchronous>, transform_indices = @transform_6, window_bounds = array<i64: 1, 256>}, {pipeline_mode = #tpu.pipeline_mode<synchronous>, transform_indices = @transform_7, window_bounds = array<i64: 1, 256>}, {pipeline_mode = #tpu.pipeline_mode<synchronous>, transform_indices = @transform_8, window_bounds = array<i64: 1, 1>}, {transform_indices = @transform_9, window_bounds = array<i64: 8, 128>}]} {
    %c0 = arith.constant 0 : index
    %c0_0 = arith.constant 0 : index
    %0 = vector.load %arg1[%c0, %c0_0] : memref<8x32xf32, #tpu.memory_space<vmem>>, vector<8x32xf32>
    %1 = arith.truncf %0 : vector<8x32xf32> to vector<8x32xbf16>
    %c0_1 = arith.constant 0 : index
    %c0_2 = arith.constant 0 : index
    %2 = vector.load %arg2[%c0_1, %c0_2] : memref<32x512xbf16, #tpu.memory_space<vmem>>, vector<32x512xbf16>
    %cst = arith.constant dense<0.000000e+00> : vector<8x512xf32>
    %3 = tpu.matmul %1, %2, %cst {dimension_numbers = #tpu.dot_dimension_numbers<[1], [0], [0], [1], [0, 0, 1, 1], [], []>} : vector<8x32xbf16>, vector<32x512xbf16>, vector<8x512xf32> -> vector<8x512xf32>
    %c0_3 = arith.constant 0 : index
    %c0_4 = arith.constant 0 : index
    %4 = vector.load %arg3[%c0_3, %c0_4] : memref<1x512xf32, #tpu.memory_space<vmem>>, vector<1x512xf32>
    %5 = vector.broadcast %4 : vector<1x512xf32> to vector<8x512xf32>
    %6 = arith.addf %3, %5 : vector<8x512xf32>
    %cst_5 = arith.constant 0.000000e+00 : f32
    %7 = vector.broadcast %cst_5 : f32 to vector<8x512xf32>
    %8 = arith.maximumf %6, %7 : vector<8x512xf32>
    %9 = arith.truncf %8 : vector<8x512xf32> to vector<8x512xbf16>
    %c0_6 = arith.constant 0 : index
    %c0_7 = arith.constant 0 : index
    %10 = vector.load %arg4[%c0_6, %c0_7] : memref<512x1024xbf16, #tpu.memory_space<vmem>>, vector<512x1024xbf16>
    %cst_8 = arith.constant dense<0.000000e+00> : vector<8x1024xf32>
    %11 = tpu.matmul %9, %10, %cst_8 {dimension_numbers = #tpu.dot_dimension_numbers<[1], [0], [0], [1], [0, 0, 1, 1], [], []>} : vector<8x512xbf16>, vector<512x1024xbf16>, vector<8x1024xf32> -> vector<8x1024xf32>
    %c0_9 = arith.constant 0 : index
    %c0_10 = arith.constant 0 : index
    %12 = vector.load %arg5[%c0_9, %c0_10] : memref<1x1024xf32, #tpu.memory_space<vmem>>, vector<1x1024xf32>
    %13 = vector.broadcast %12 : vector<1x1024xf32> to vector<8x1024xf32>
    %14 = arith.addf %11, %13 : vector<8x1024xf32>
    %cst_11 = arith.constant 0.000000e+00 : f32
    %15 = vector.broadcast %cst_11 : f32 to vector<8x1024xf32>
    %16 = arith.maximumf %14, %15 : vector<8x1024xf32>
    %17 = arith.truncf %16 : vector<8x1024xf32> to vector<8x1024xbf16>
    %c0_12 = arith.constant 0 : index
    %c0_13 = arith.constant 0 : index
    %18 = vector.load %arg6[%c0_12, %c0_13] : memref<1024x256xbf16, #tpu.memory_space<vmem>>, vector<1024x256xbf16>
    %cst_14 = arith.constant dense<0.000000e+00> : vector<8x256xf32>
    %19 = tpu.matmul %17, %18, %cst_14 {dimension_numbers = #tpu.dot_dimension_numbers<[1], [0], [0], [1], [0, 0, 1, 1], [], []>} : vector<8x1024xbf16>, vector<1024x256xbf16>, vector<8x256xf32> -> vector<8x256xf32>
    %c0_15 = arith.constant 0 : index
    %c0_16 = arith.constant 0 : index
    %20 = vector.load %arg7[%c0_15, %c0_16] : memref<1x256xf32, #tpu.memory_space<vmem>>, vector<1x256xf32>
    %21 = vector.broadcast %20 : vector<1x256xf32> to vector<8x256xf32>
    %22 = arith.addf %19, %21 : vector<8x256xf32>
    %cst_17 = arith.constant 0.000000e+00 : f32
    %23 = vector.broadcast %cst_17 : f32 to vector<8x256xf32>
    %24 = arith.maximumf %22, %23 : vector<8x256xf32>
    %c0_18 = arith.constant 0 : index
    %c0_19 = arith.constant 0 : index
    %25 = vector.load %arg8[%c0_18, %c0_19] : memref<1x256xbf16, #tpu.memory_space<vmem>>, vector<1x256xbf16>
    %26 = arith.extf %25 : vector<1x256xbf16> to vector<1x256xf32>
    %27 = vector.broadcast %26 : vector<1x256xf32> to vector<8x256xf32>
    %28 = arith.mulf %24, %27 : vector<8x256xf32>
    %cst_20 = arith.constant dense<0.000000e+00> : vector<8xf32>
    %29 = vector.multi_reduction <add>, %28, %cst_20 [1] : vector<8x256xf32> to vector<8xf32>
    %30 = vector.shape_cast %29 : vector<8xf32> to vector<8x1xf32>
    %c0_21 = arith.constant 0 : index
    %c0_22 = arith.constant 0 : index
    %31 = vector.load %arg9[%c0_21, %c0_22] : memref<1x1xf32, #tpu.memory_space<vmem>>, vector<1x1xf32>
    %32 = vector.broadcast %31 : vector<1x1xf32> to vector<8x1xf32>
    %33 = arith.addf %30, %32 : vector<8x1xf32>
    %34 = math.tanh %33 : vector<8x1xf32>
    %35 = vector.shape_cast %34 : vector<8x1xf32> to vector<8x1xf32>
    %36 = vector.broadcast %35 : vector<8x1xf32> to vector<8x128xf32>
    %c0_23 = arith.constant 0 : index
    %c0_24 = arith.constant 0 : index
    %37 = vector.load %arg10[%c0_23, %c0_24] : memref<8x128xf32, #tpu.memory_space<vmem>>, vector<8x128xf32>
    tpu.vector_store %arg10[%c0_23, %c0_24], %36 {strides = array<i32>} : memref<8x128xf32, #tpu.memory_space<vmem>>, vector<8x128xf32>,
    return
  }
  func.func @transform_0(%arg0: i32) -> (i32, i32) {
    %c0_i32 = arith.constant 0 : i32
    %c0_i32_0 = arith.constant 0 : i32
    return %arg0, %c0_i32 : i32, i32
  }
  func.func @transform_1(%arg0: i32) -> (i32, i32) {
    %c0_i32 = arith.constant 0 : i32
    %c0_i32_0 = arith.constant 0 : i32
    %c0_i32_1 = arith.constant 0 : i32
    return %c0_i32, %c0_i32_0 : i32, i32
  }
  func.func @transform_2(%arg0: i32) -> (i32, i32) {
    %c0_i32 = arith.constant 0 : i32
    %c0_i32_0 = arith.constant 0 : i32
    %c0_i32_1 = arith.constant 0 : i32
    return %c0_i32, %c0_i32_0 : i32, i32
  }
  func.func @transform_3(%arg0: i32) -> (i32, i32) {
    %c0_i32 = arith.constant 0 : i32
    %c0_i32_0 = arith.constant 0 : i32
    %c0_i32_1 = arith.constant 0 : i32
    return %c0_i32, %c0_i32_0 : i32, i32
  }
  func.func @transform_4(%arg0: i32) -> (i32, i32) {
    %c0_i32 = arith.constant 0 : i32
    %c0_i32_0 = arith.constant 0 : i32
    %c0_i32_1 = arith.constant 0 : i32
    return %c0_i32, %c0_i32_0 : i32, i32
  }
  func.func @transform_5(%arg0: i32) -> (i32, i32) {
    %c0_i32 = arith.constant 0 : i32
    %c0_i32_0 = arith.constant 0 : i32
    %c0_i32_1 = arith.constant 0 : i32
    return %c0_i32, %c0_i32_0 : i32, i32
  }
  func.func @transform_6(%arg0: i32) -> (i32, i32) {
    %c0_i32 = arith.constant 0 : i32
    %c0_i32_0 = arith.constant 0 : i32
    %c0_i32_1 = arith.constant 0 : i32
    return %c0_i32, %c0_i32_0 : i32, i32
  }
  func.func @transform_7(%arg0: i32) -> (i32, i32) {
    %c0_i32 = arith.constant 0 : i32
    %c0_i32_0 = arith.constant 0 : i32
    %c0_i32_1 = arith.constant 0 : i32
    return %c0_i32, %c0_i32_0 : i32, i32
  }
  func.func @transform_8(%arg0: i32) -> (i32, i32) {
    %c0_i32 = arith.constant 0 : i32
    %c0_i32_0 = arith.constant 0 : i32
    %c0_i32_1 = arith.constant 0 : i32
    return %c0_i32, %c0_i32_0 : i32, i32
  }
  func.func @transform_9(%arg0: i32) -> (i32, i32) {
    %c0_i32 = arith.constant 0 : i32
    %c0_i32_0 = arith.constant 0 : i32
    return %arg0, %c0_i32 : i32, i32
  }
}

</mosaic_0001>

<llo_original>
// kernel: tpu_custom_call.1
$region0: #{tpu_custom_call.1}
  #allocation0 [shape = 'u32[]', space=smem, size = 0x4, offset = 0x4, fixed_abs, tag = 'smem constant byte address 0x4 - core index']
  #allocation1 [shape = 'u32[144,128]{1,0:T(1,128)}', space=vmem, size = 0x12000, scoped, tag = 'internal scratch']
  #allocation2 [shape = 'f32[1,1]{1,0:T(1,128)S(1)}', space=vmem, size = 0x200, scoped, tag = 'scoped memory for tpu_custom_call.1']
  %s0 = inlined_call_operand.hbm [shape: f32[8,32], index: 0, kind: input, shape index: {}]
  %s1 = inlined_call_operand.hbm [shape: bf16[32,512], index: 1, kind: input, shape index: {}]
  %s2 = inlined_call_operand.vmem [shape: f32[1,512], index: 2, kind: input, shape index: {}]
  %s3 = inlined_call_operand.hbm [shape: bf16[512,1024], index: 3, kind: input, shape index: {}]
  %s4 = inlined_call_operand.vmem [shape: f32[1,1024], index: 4, kind: input, shape index: {}]
  %s5 = inlined_call_operand.hbm [shape: bf16[1024,256], index: 5, kind: input, shape index: {}]
  %s6 = inlined_call_operand.vmem [shape: f32[1,256], index: 6, kind: input, shape index: {}]
  %s7 = inlined_call_operand.vmem [shape: bf16[1,256], index: 7, kind: input, shape index: {}]
  %s8 = inlined_call_operand.<no memory space> [shape: f32[1,1], index: 8, kind: input, shape index: {}]
  %s9 = inlined_call_operand.hbm [shape: f32[8,128], index: 9, kind: output, shape index: {}]
  %s10 = sld [smem:[#allocation0]]
  $region62: #{tpu_custom_call.1} parent=0
    _
  %s12 = ssub.s32 1, %s10
  %s13 = scalar_select 0, %s12, %s10
  %v14 = vstv %s8
  %15 = vst [vmem:[#allocation2] sm:$0x1] %v14
  $region1: #{tpu_custom_call.1} parent=0
    #allocation3 [shape = 'u8[4096]{0}', space=vmem, size = 0x1000, scoped, tag = 'input window, operand 0, single buffered']
    #allocation4 [shape = 's32[1]{0}', space=sflag, size = 0x4, scoped, tag = 'scoped memory for tpu_custom_call.1']
    #allocation5 [shape = 's32[1]{0}', space=sflag, size = 0x4, scoped, tag = 'scoped memory for tpu_custom_call.1']
    #allocation6 [shape = 'u8[32768]{0}', space=vmem, size = 0x8000, scoped, tag = 'input window, operand 1, single buffered']
    #allocation7 [shape = 's32[1]{0}', space=sflag, size = 0x4, scoped, tag = 'scoped memory for tpu_custom_call.1']
    #allocation8 [shape = 'u8[1048576]{0}', space=vmem, size = 0x100000, scoped, tag = 'input window, operand 3, single buffered']
    #allocation9 [shape = 'u8[524288]{0}', space=vmem, size = 0x80000, scoped, tag = 'input window, operand 5, single buffered']
    #allocation10 [shape = 's32[1]{0}', space=sflag, size = 0x4, scoped, tag = 'scoped memory for tpu_custom_call.1']
    #allocation11 [shape = 'u8[4096]{0}', space=vmem, size = 0x1000, scoped, tag = 'output window, operand 0, single buffered']
    %16 = vsyncpa [#allocation4], 0
    %17 = vsyncpa [#allocation7], 0
    %18 = vsyncpa [#allocation10], 0
    %19 = vsyncpa [#allocation5], 0
    // Predicated region
    $region2: #{tpu_custom_call.1} parent=1 // pred_check
      _
    $region3: #{tpu_custom_call.1} parent=1 // pred_check_branch
      %21 = sbr.rel (0) target = $region5
    $region4: #{tpu_custom_call.1} parent=1 // pred_region
      %s23 = ssub.s32 128, 128
      %24 = vsyncadd [#allocation4], %s23
      %s26 = sshll.u32 [#allocation3], 4
      %s27 = int_to_ptr.vmem [resolvable:$true] %s26
      %29 = dma.hbm_to_vmem [thread:$0]  %s0, 128, %s27, [#allocation4]
    $region5: #{tpu_custom_call.1} parent=1 // pred_fallthru
      _
    // Predicated region
    $region6: #{tpu_custom_call.1} parent=1 // pred_check
      _
    $region7: #{tpu_custom_call.1} parent=1 // pred_check_branch
      %31 = sbr.rel (0) target = $region9
    $region8: #{tpu_custom_call.1} parent=1 // pred_region
      %s33 = ssub.s32 1024, 1024
      %34 = vsyncadd [#allocation7], %s33
      %s35 = sshll.u32 [#allocation6], 4
      %s36 = int_to_ptr.vmem [resolvable:$true] %s35
      %41 = dma.hbm_to_vmem [thread:$0]  %s1, 1024, %s36, [#allocation7], 256, 256, 16
    $region9: #{tpu_custom_call.1} parent=1 // pred_fallthru
      _
    // Predicated region
    $region10: #{tpu_custom_call.1} parent=1 // pred_check
      _
    $region11: #{tpu_custom_call.1} parent=1 // pred_check_branch
      %43 = sbr.rel (0) target = $region13
    $region12: #{tpu_custom_call.1} parent=1 // pred_region
      _
    $region13: #{tpu_custom_call.1} parent=1 // pred_fallthru
      _
    // Predicated region
    $region14: #{tpu_custom_call.1} parent=1 // pred_check
      _
    $region15: #{tpu_custom_call.1} parent=1 // pred_check_branch
      %45 = sbr.rel (0) target = $region17
    $region16: #{tpu_custom_call.1} parent=1 // pred_region
      %s47 = ssub.s32 32768, 32768
      %48 = vsyncadd [#allocation7], %s47
      %s49 = sshll.u32 [#allocation8], 4
      %s50 = int_to_ptr.vmem [resolvable:$true] %s49
      %55 = dma.hbm_to_vmem [thread:$0]  %s3, 32768, %s50, [#allocation7], 512, 512, 32
    $region17: #{tpu_custom_call.1} parent=1 // pred_fallthru
      _
    // Predicated region
    $region18: #{tpu_custom_call.1} parent=1 // pred_check
      _
    $region19: #{tpu_custom_call.1} parent=1 // pred_check_branch
      %57 = sbr.rel (0) target = $region21
    $region20: #{tpu_custom_call.1} parent=1 // pred_region
      _
    $region21: #{tpu_custom_call.1} parent=1 // pred_fallthru
      _
    // Predicated region
    $region22: #{tpu_custom_call.1} parent=1 // pred_check
      _
    $region23: #{tpu_custom_call.1} parent=1 // pred_check_branch
      %59 = sbr.rel (0) target = $region25
    $region24: #{tpu_custom_call.1} parent=1 // pred_region
      %s61 = ssub.s32 16384, 16384
      %62 = vsyncadd [#allocation10], %s61
      %s63 = sshll.u32 [#allocation9], 4
      %s64 = int_to_ptr.vmem [resolvable:$true] %s63
      %69 = dma.hbm_to_vmem [thread:$0]  %s5, 16384, %s64, [#allocation10], 128, 128, 8
    $region25: #{tpu_custom_call.1} parent=1 // pred_fallthru
      _
    // Predicated region
    $region26: #{tpu_custom_call.1} parent=1 // pred_check
      _
    $region27: #{tpu_custom_call.1} parent=1 // pred_check_branch
      %71 = sbr.rel (0) target = $region29
    $region28: #{tpu_custom_call.1} parent=1 // pred_region
      _
    $region29: #{tpu_custom_call.1} parent=1 // pred_fallthru
      _
    // Predicated region
    $region30: #{tpu_custom_call.1} parent=1 // pred_check
      _
    $region31: #{tpu_custom_call.1} parent=1 // pred_check_branch
      %73 = sbr.rel (0) target = $region33
    $region32: #{tpu_custom_call.1} parent=1 // pred_region
      _
    $region33: #{tpu_custom_call.1} parent=1 // pred_fallthru
      _
    // Predicated region
    $region34: #{tpu_custom_call.1} parent=1 // pred_check
      _
    $region35: #{tpu_custom_call.1} parent=1 // pred_check_branch
      %75 = sbr.rel (0) target = $region37
    $region36: #{tpu_custom_call.1} parent=1 // pred_region
      _
    $region37: #{tpu_custom_call.1} parent=1 // pred_fallthru
      _
    // Predicated region
    $region38: #{tpu_custom_call.1} parent=1 // pred_check
      _
    $region39: #{tpu_custom_call.1} parent=1 // pred_check_branch
      %77 = sbr.rel (0) target = $region41
    $region40: #{tpu_custom_call.1} parent=1 // pred_region
      %78 = dma.done [#allocation4], 128
    $region41: #{tpu_custom_call.1} parent=1 // pred_fallthru
      _
    // Predicated region
    $region42: #{tpu_custom_call.1} parent=1 // pred_check
      _
    $region43: #{tpu_custom_call.1} parent=1 // pred_check_branch
      %80 = sbr.rel (0) target = $region45
    $region44: #{tpu_custom_call.1} parent=1 // pred_region
      %81 = dma.done [#allocation7], 1024
    $region45: #{tpu_custom_call.1} parent=1 // pred_fallthru
      _
    // Predicated region
    $region46: #{tpu_custom_call.1} parent=1 // pred_check
      _
    $region47: #{tpu_custom_call.1} parent=1 // pred_check_branch
      %83 = sbr.rel (0) target = $region49
    $region48: #{tpu_custom_call.1} parent=1 // pred_region
      %84 = dma.done [#allocation7], 32768
    $region49: #{tpu_custom_call.1} parent=1 // pred_fallthru
      _
    // Predicated region
    $region50: #{tpu_custom_call.1} parent=1 // pred_check
      _
    $region51: #{tpu_custom_call.1} parent=1 // pred_check_branch
      %86 = sbr.rel (0) target = $region53
    $region52: #{tpu_custom_call.1} parent=1 // pred_region
      %87 = dma.done [#allocation10], 16384
    $region53: #{tpu_custom_call.1} parent=1 // pred_fallthru
      _
    %v89 = vld [vmem:[#allocation3] sm:$0xff]
    %v90 = vpack.c.bf16 %v89, %v89
    %v91 = vld [vmem:[#allocation6] sm:$0xff]
    %v92 = vld [vmem:[#allocation6 + $0x8] sm:$0xff]
    %v93 = vld [vmem:[#allocation6 + $0x10] sm:$0xff]
    %v94 = vld [vmem:[#allocation6 + $0x18] sm:$0xff]
    %v95 = vld [vmem:[#allocation6 + $0x20] sm:$0xff]
    %v96 = vld [vmem:[#allocation6 + $0x28] sm:$0xff]
    %v97 = vld [vmem:[#allocation6 + $0x30] sm:$0xff]
    %v98 = vld [vmem:[#allocation6 + $0x38] sm:$0xff]
    %v99 = vld [vmem:[%s2] sm:$0xf]
    %v101 = vlaneseq
    %v102 = vshrl.u32 %v101, 7
    %v103 = vsub.s32 0, %v102
    %v104 = vrot.slane %v99, %v103
    %v105 = vlaneseq
    %v106 = vshrl.u32 %v105, 7
    %v107 = vsub.s32 1, %v106
    %v108 = vrot.slane %v99, %v107
    %v109 = vlaneseq
    %v110 = vshrl.u32 %v109, 7
    %v111 = vsub.s32 2, %v110
    %v112 = vrot.slane %v99, %v111
    %v113 = vlaneseq
    %v114 = vshrl.u32 %v113, 7
    %v115 = vsub.s32 3, %v114
    %v116 = vrot.slane %v99, %v115
    %v129 = vunpack.c.l.b16 %v91
    %v130 = vunpack.c.h.b16 %v91
    %v131 = vunpack.c.l.b16 %v92
    %v132 = vunpack.c.h.b16 %v92
    %v133 = vunpack.c.l.b16 %v93
    %v134 = vunpack.c.h.b16 %v93
    %v135 = vunpack.c.l.b16 %v94
    %v136 = vunpack.c.h.b16 %v94
    %v137 = vunpack.c.l.b16 %v95
    %v138 = vunpack.c.h.b16 %v95
    %v139 = vunpack.c.l.b16 %v96
    %v140 = vunpack.c.h.b16 %v96
    %v141 = vunpack.c.l.b16 %v97
    %v142 = vunpack.c.h.b16 %v97
    %v143 = vunpack.c.l.b16 %v98
    %v144 = vunpack.c.h.b16 %v98
    %v145 = vpack.c.b16 %v133, %v129
    %v146 = vpack.c.b16 %v134, %v130
    %v147 = vpack.c.b16 %v135, %v131
    %v148 = vpack.c.b16 %v136, %v132
    %v149 = vpack.c.b16 %v141, %v137
    %v150 = vpack.c.b16 %v142, %v138
    %v151 = vpack.c.b16 %v143, %v139
    %v152 = vpack.c.b16 %v144, %v140
    %vm161 = vcmask 261120
    %v163 = vsel %vm161, %v90, 0
    %165 = vmatprep.subr.bf16.mxu0 %v146
    %166 = vmatpush1.bf16.msra.mxu0 %v145
    %167 = vmatprep.subr.bf16.mxu0 %v150
    %168 = vmatpush1.bf16.msra.mxu0 %v149
    %169 = vmatprep.subr.bf16.mxu0 0
    %170 = vmatpush1.bf16.msra.mxu0 0
    %171 = vmatprep.subr.bf16.mxu0 0
    %172 = vmatpush1.bf16.msra.mxu0 0
    %173 = vmatprep.subr.bf16.mxu0 0
    %174 = vmatpush1.bf16.msra.mxu0 0
    %175 = vmatprep.subr.bf16.mxu0 0
    %176 = vmatpush1.bf16.msra.mxu0 0
    %177 = vmatprep.subr.bf16.mxu0 0
    %178 = vmatpush1.bf16.msra.mxu0 0
    %179 = vmatprep.subr.bf16.mxu0 0
    %180 = vmatpush1.bf16.msra.mxu0 0
    %181 = vmatprep.subr.bf16.mxu0 0
    %182 = vmatpush1.bf16.msra.mxu0 0
    %183 = vmatprep.subr.bf16.mxu0 0
    %184 = vmatpush1.bf16.msra.mxu0 0
    %185 = vmatprep.subr.bf16.mxu0 0
    %186 = vmatpush1.bf16.msra.mxu0 0
    %187 = vmatprep.subr.bf16.mxu0 0
    %188 = vmatpush1.bf16.msra.mxu0 0
    %189 = vmatprep.subr.bf16.mxu0 0
    %190 = vmatpush1.bf16.msra.mxu0 0
    %191 = vmatprep.subr.bf16.mxu0 0
    %192 = vmatpush1.bf16.msra.mxu0 0
    %193 = vmatprep.subr.bf16.mxu0 0
    %194 = vmatpush1.bf16.msra.mxu0 0
    %195 = vmatprep.subr.bf16.mxu0 0
    %196 = vmatpush1.bf16.msra.mxu0 0
    %197 = vmatprep.mubr.bf16.mxu0 0
    %198 = vmatmul.mubr.bf16.gmra.mrb[0].mxu0 %v163
    %v199 = vpop.f32.mrb[0].mxu0
    %v200 = vadd.f32 %v104, %v199
    %v201 = vpop.f32.mrb[0].mxu0
    %v202 = vadd.f32 %v108, %v201
    %v203 = vpop.f32.mrb[0].mxu0
    %v204 = vpop.f32.mrb[0].mxu0
    %205 = vdwg.mxu0
    %206 = vmatprep.subr.bf16.mxu0 %v148
    %207 = vmatpush1.bf16.msra.mxu0 %v147
    %208 = vmatprep.subr.bf16.mxu0 %v152
    %209 = vmatpush1.bf16.msra.mxu0 %v151
    %210 = vmatprep.subr.bf16.mxu0 0
    %211 = vmatpush1.bf16.msra.mxu0 0
    %212 = vmatprep.subr.bf16.mxu0 0
    %213 = vmatpush1.bf16.msra.mxu0 0
    %214 = vmatprep.subr.bf16.mxu0 0
    %215 = vmatpush1.bf16.msra.mxu0 0
    %216 = vmatprep.subr.bf16.mxu0 0
    %217 = vmatpush1.bf16.msra.mxu0 0
    %218 = vmatprep.subr.bf16.mxu0 0
    %219 = vmatpush1.bf16.msra.mxu0 0
    %220 = vmatprep.subr.bf16.mxu0 0
    %221 = vmatpush1.bf16.msra.mxu0 0
    %222 = vmatprep.subr.bf16.mxu0 0
    %223 = vmatpush1.bf16.msra.mxu0 0
    %224 = vmatprep.subr.bf16.mxu0 0
    %225 = vmatpush1.bf16.msra.mxu0 0
    %226 = vmatprep.subr.bf16.mxu0 0
    %227 = vmatpush1.bf16.msra.mxu0 0
    %228 = vmatprep.subr.bf16.mxu0 0
    %229 = vmatpush1.bf16.msra.mxu0 0
    %230 = vmatprep.subr.bf16.mxu0 0
    %231 = vmatpush1.bf16.msra.mxu0 0
    %232 = vmatprep.subr.bf16.mxu0 0
    %233 = vmatpush1.bf16.msra.mxu0 0
    %234 = vmatprep.subr.bf16.mxu0 0
    %235 = vmatpush1.bf16.msra.mxu0 0
    %236 = vmatprep.subr.bf16.mxu0 0
    %237 = vmatpush1.bf16.msra.mxu0 0
    %238 = vmatprep.mubr.bf16.mxu0 0
    %239 = vmatmul.mubr.bf16.gmra.mrb[0].mxu0 %v163
    %v240 = vpop.f32.mrb[0].mxu0
    %v241 = vadd.f32 %v112, %v240
    %v242 = vpop.f32.mrb[0].mxu0
    %v243 = vadd.f32 %v116, %v242
    %v244 = vpop.f32.mrb[0].mxu0
    %v245 = vpop.f32.mrb[0].mxu0
    %246 = vdwg.mxu0
    %v247 = vmax.f32 %v200, 0.0
    %v248 = vmax.f32 %v202, 0.0
    %v249 = vmax.f32 %v241, 0.0
    %v250 = vmax.f32 %v243, 0.0
    %v251 = vpack.c.bf16 %v247, %v247
    %v252 = vpack.c.bf16 %v248, %v248
    %v253 = vpack.c.bf16 %v249, %v249
    %v254 = vpack.c.bf16 %v250, %v250
    %v255 = vld [vmem:[#allocation8] sm:$0xff]
    %v256 = vld [vmem:[#allocation8 + $0x8] sm:$0xff]
    %v257 = vld [vmem:[#allocation8 + $0x10] sm:$0xff]
    %v258 = vld [vmem:[#allocation8 + $0x18] sm:$0xff]
    %v259 = vld [vmem:[#allocation8 + $0x20] sm:$0xff]
    %v260 = vld [vmem:[#allocation8 + $0x28] sm:$0xff]
    %v261 = vld [vmem:[#allocation8 + $0x30] sm:$0xff]
    %v262 = vld [vmem:[#allocation8 + $0x38] sm:$0xff]
    %v263 = vld [vmem:[#allocation8 + $0x40] sm:$0xff]
    %v264 = vld [vmem:[#allocation8 + $0x48] sm:$0xff]
    %v265 = vld [vmem:[#allocation8 + $0x50] sm:$0xff]
    %v266 = vld [vmem:[#allocation8 + $0x58] sm:$0xff]
    %v267 = vld [vmem:[#allocation8 + $0x60] sm:$0xff]
    %v268 = vld [vmem:[#allocation8 + $0x68] sm:$0xff]
    %v269 = vld [vmem:[#allocation8 + $0x70] sm:$0xff]
    %v270 = vld [vmem:[#allocation8 + $0x78] sm:$0xff]
    %v271 = vld [vmem:[#allocation8 + $0x80] sm:$0xff]
    %v272 = vld [vmem:[#allocation8 + $0x88] sm:$0xff]
    %v273 = vld [vmem:[#allocation8 + $0x90] sm:$0xff]
    %v274 = vld [vmem:[#allocation8 + $0x98] sm:$0xff]
    %v275 = vld [vmem:[#allocation8 + $0xa0] sm:$0xff]
    %v276 = vld [vmem:[#allocation8 + $0xa8] sm:$0xff]
    %v277 = vld [vmem:[#allocation8 + $0xb0] sm:$0xff]
    %v278 = vld [vmem:[#allocation8 + $0xb8] sm:$0xff]
    %v279 = vld [vmem:[#allocation8 + $0xc0] sm:$0xff]
    %v280 = vld [vmem:[#allocation8 + $0xc8] sm:$0xff]
    %v281 = vld [vmem:[#allocation8 + $0xd0] sm:$0xff]
    %v282 = vld [vmem:[#allocation8 + $0xd8] sm:$0xff]
    %v283 = vld [vmem:[#allocation8 + $0xe0] sm:$0xff]
    %v284 = vld [vmem:[#allocation8 + $0xe8] sm:$0xff]
    %v285 = vld [vmem:[#allocation8 + $0xf0] sm:$0xff]
    %v286 = vld [vmem:[#allocation8 + $0xf8] sm:$0xff]
    %v287 = vld [vmem:[#allocation8 + $0x100] sm:$0xff]
    %v288 = vld [vmem:[#allocation8 + $0x108] sm:$0xff]
    %v289 = vld [vmem:[#allocation8 + $0x110] sm:$0xff]
    %v290 = vld [vmem:[#allocation8 + $0x118] sm:$0xff]
    %v291 = vld [vmem:[#allocation8 + $0x120] sm:$0xff]
    %v292 = vld [vmem:[#allocation8 + $0x128] sm:$0xff]
    %v293 = vld [vmem:[#allocation8 + $0x130] sm:$0xff]
    %v294 = vld [vmem:[#allocation8 + $0x138] sm:$0xff]
    %v295 = vld [vmem:[#allocation8 + $0x140] sm:$0xff]
    %v296 = vld [vmem:[#allocation8 + $0x148] sm:$0xff]
    %v297 = vld [vmem:[#allocation8 + $0x150] sm:$0xff]
    %v298 = vld [vmem:[#allocation8 + $0x158] sm:$0xff]
    %v299 = vld [vmem:[#allocation8 + $0x160] sm:$0xff]
    %v300 = vld [vmem:[#allocation8 + $0x168] sm:$0xff]
    %v301 = vld [vmem:[#allocation8 + $0x170] sm:$0xff]
    %v302 = vld [vmem:[#allocation8 + $0x178] sm:$0xff]
    %v303 = vld [vmem:[#allocation8 + $0x180] sm:$0xff]
    %v304 = vld [vmem:[#allocation8 + $0x188] sm:$0xff]
    %v305 = vld [vmem:[#allocation8 + $0x190] sm:$0xff]
    %v306 = vld [vmem:[#allocation8 + $0x198] sm:$0xff]
    %v307 = vld [vmem:[#allocation8 + $0x1a0] sm:$0xff]
    %v308 = vld [vmem:[#allocation8 + $0x1a8] sm:$0xff]
    %v309 = vld [vmem:[#allocation8 + $0x1b0] sm:$0xff]
    %v310 = vld [vmem:[#allocation8 + $0x1b8] sm:$0xff]
    %v311 = vld [vmem:[#allocation8 + $0x1c0] sm:$0xff]
    %v312 = vld [vmem:[#allocation8 + $0x1c8] sm:$0xff]
    %v313 = vld [vmem:[#allocation8 + $0x1d0] sm:$0xff]
    %v314 = vld [vmem:[#allocation8 + $0x1d8] sm:$0xff]
    %v315 = vld [vmem:[#allocation8 + $0x1e0] sm:$0xff]
    %v316 = vld [vmem:[#allocation8 + $0x1e8] sm:$0xff]
    %v317 = vld [vmem:[#allocation8 + $0x1f0] sm:$0xff]
    %v318 = vld [vmem:[#allocation8 + $0x1f8] sm:$0xff]
    %v319 = vld [vmem:[#allocation8 + $0x200] sm:$0xff]
    %v320 = vld [vmem:[#allocation8 + $0x208] sm:$0xff]
    %v321 = vld [vmem:[#allocation8 + $0x210] sm:$0xff]
    %v322 = vld [vmem:[#allocation8 + $0x218] sm:$0xff]
    %v323 = vld [vmem:[#allocation8 + $0x220] sm:$0xff]
    %v324 = vld [vmem:[#allocation8 + $0x228] sm:$0xff]
    %v325 = vld [vmem:[#allocation8 + $0x230] sm:$0xff]
    %v326 = vld [vmem:[#allocation8 + $0x238] sm:$0xff]
    %v327 = vld [vmem:[#allocation8 + $0x240] sm:$0xff]
    %v328 = vld [vmem:[#allocation8 + $0x248] sm:$0xff]
    %v329 = vld [vmem:[#allocation8 + $0x250] sm:$0xff]
    %v330 = vld [vmem:[#allocation8 + $0x258] sm:$0xff]
    %v331 = vld [vmem:[#allocation8 + $0x260] sm:$0xff]
    %v332 = vld [vmem:[#allocation8 + $0x268] sm:$0xff]
    %v333 = vld [vmem:[#allocation8 + $0x270] sm:$0xff]
    %v334 = vld [vmem:[#allocation8 + $0x278] sm:$0xff]
    %v335 = vld [vmem:[#allocation8 + $0x280] sm:$0xff]
    %v336 = vld [vmem:[#allocation8 + $0x288] sm:$0xff]
    %v337 = vld [vmem:[#allocation8 + $0x290] sm:$0xff]
    %v338 = vld [vmem:[#allocation8 + $0x298] sm:$0xff]
    %v339 = vld [vmem:[#allocation8 + $0x2a0] sm:$0xff]
    %v340 = vld [vmem:[#allocation8 + $0x2a8] sm:$0xff]
    %v341 = vld [vmem:[#allocation8 + $0x2b0] sm:$0xff]
    %v342 = vld [vmem:[#allocation8 + $0x2b8] sm:$0xff]
    %v343 = vld [vmem:[#allocation8 + $0x2c0] sm:$0xff]
    %v344 = vld [vmem:[#allocation8 + $0x2c8] sm:$0xff]
    %v345 = vld [vmem:[#allocation8 + $0x2d0] sm:$0xff]
    %v346 = vld [vmem:[#allocation8 + $0x2d8] sm:$0xff]
    %v347 = vld [vmem:[#allocation8 + $0x2e0] sm:$0xff]
    %v348 = vld [vmem:[#allocation8 + $0x2e8] sm:$0xff]
    %v349 = vld [vmem:[#allocation8 + $0x2f0] sm:$0xff]
    %v350 = vld [vmem:[#allocation8 + $0x2f8] sm:$0xff]
    %v351 = vld [vmem:[#allocation8 + $0x300] sm:$0xff]
    %v352 = vld [vmem:[#allocation8 + $0x308] sm:$0xff]
    %v353 = vld [vmem:[#allocation8 + $0x310] sm:$0xff]
    %v354 = vld [vmem:[#allocation8 + $0x318] sm:$0xff]
    %v355 = vld [vmem:[#allocation8 + $0x320] sm:$0xff]
    %v356 = vld [vmem:[#allocation8 + $0x328] sm:$0xff]
    %v357 = vld [vmem:[#allocation8 + $0x330] sm:$0xff]
    %v358 = vld [vmem:[#allocation8 + $0x338] sm:$0xff]
    %v359 = vld [vmem:[#allocation8 + $0x340] sm:$0xff]
    %v360 = vld [vmem:[#allocation8 + $0x348] sm:$0xff]
    %v361 = vld [vmem:[#allocation8 + $0x350] sm:$0xff]
    %v362 = vld [vmem:[#allocation8 + $0x358] sm:$0xff]
    %v363 = vld [vmem:[#allocation8 + $0x360] sm:$0xff]
    %v364 = vld [vmem:[#allocation8 + $0x368] sm:$0xff]
    %v365 = vld [vmem:[#allocation8 + $0x370] sm:$0xff]
    %v366 = vld [vmem:[#allocation8 + $0x378] sm:$0xff]
    %v367 = vld [vmem:[#allocation8 + $0x380] sm:$0xff]
    %v368 = vld [vmem:[#allocation8 + $0x388] sm:$0xff]
    %v369 = vld [vmem:[#allocation8 + $0x390] sm:$0xff]
    %v370 = vld [vmem:[#allocation8 + $0x398] sm:$0xff]
    %v371 = vld [vmem:[#allocation8 + $0x3a0] sm:$0xff]
    %v372 = vld [vmem:[#allocation8 + $0x3a8] sm:$0xff]
    %v373 = vld [vmem:[#allocation8 + $0x3b0] sm:$0xff]
    %v374 = vld [vmem:[#allocation8 + $0x3b8] sm:$0xff]
    %v375 = vld [vmem:[#allocation8 + $0x3c0] sm:$0xff]
    %v376 = vld [vmem:[#allocation8 + $0x3c8] sm:$0xff]
    %v377 = vld [vmem:[#allocation8 + $0x3d0] sm:$0xff]
    %v378 = vld [vmem:[#allocation8 + $0x3d8] sm:$0xff]
    %v379 = vld [vmem:[#allocation8 + $0x3e0] sm:$0xff]
    %v380 = vld [vmem:[#allocation8 + $0x3e8] sm:$0xff]
    %v381 = vld [vmem:[#allocation8 + $0x3f0] sm:$0xff]
    %v382 = vld [vmem:[#allocation8 + $0x3f8] sm:$0xff]
    %v383 = vld [vmem:[#allocation8 + $0x400] sm:$0xff]
    %v384 = vld [vmem:[#allocation8 + $0x408] sm:$0xff]
    %v385 = vld [vmem:[#allocation8 + $0x410] sm:$0xff]
    %v386 = vld [vmem:[#allocation8 + $0x418] sm:$0xff]
    %v387 = vld [vmem:[#allocation8 + $0x420] sm:$0xff]
    %v388 = vld [vmem:[#allocation8 + $0x428] sm:$0xff]
    %v389 = vld [vmem:[#allocation8 + $0x430] sm:$0xff]
    %v390 = vld [vmem:[#allocation8 + $0x438] sm:$0xff]
    %v391 = vld [vmem:[#allocation8 + $0x440] sm:$0xff]
    %v392 = vld [vmem:[#allocation8 + $0x448] sm:$0xff]
    %v393 = vld [vmem:[#allocation8 + $0x450] sm:$0xff]
    %v394 = vld [vmem:[#allocation8 + $0x458] sm:$0xff]
    %v395 = vld [vmem:[#allocation8 + $0x460] sm:$0xff]
    %v396 = vld [vmem:[#allocation8 + $0x468] sm:$0xff]
    %v397 = vld [vmem:[#allocation8 + $0x470] sm:$0xff]
    %v398 = vld [vmem:[#allocation8 + $0x478] sm:$0xff]
    %v399 = vld [vmem:[#allocation8 + $0x480] sm:$0xff]
    %v400 = vld [vmem:[#allocation8 + $0x488] sm:$0xff]
    %v401 = vld [vmem:[#allocation8 + $0x490] sm:$0xff]
    %v402 = vld [vmem:[#allocation8 + $0x498] sm:$0xff]
    %v403 = vld [vmem:[#allocation8 + $0x4a0] sm:$0xff]
    %v404 = vld [vmem:[#allocation8 + $0x4a8] sm:$0xff]
    %v405 = vld [vmem:[#allocation8 + $0x4b0] sm:$0xff]
    %v406 = vld [vmem:[#allocation8 + $0x4b8] sm:$0xff]
    %v407 = vld [vmem:[#allocation8 + $0x4c0] sm:$0xff]
    %v408 = vld [vmem:[#allocation8 + $0x4c8] sm:$0xff]
    %v409 = vld [vmem:[#allocation8 + $0x4d0] sm:$0xff]
    %v410 = vld [vmem:[#allocation8 + $0x4d8] sm:$0xff]
    %v411 = vld [vmem:[#allocation8 + $0x4e0] sm:$0xff]
    %v412 = vld [vmem:[#allocation8 + $0x4e8] sm:$0xff]
    %v413 = vld [vmem:[#allocation8 + $0x4f0] sm:$0xff]
    %v414 = vld [vmem:[#allocation8 + $0x4f8] sm:$0xff]
    %v415 = vld [vmem:[#allocation8 + $0x500] sm:$0xff]
    %v416 = vld [vmem:[#allocation8 + $0x508] sm:$0xff]
    %v417 = vld [vmem:[#allocation8 + $0x510] sm:$0xff]
    %v418 = vld [vmem:[#allocation8 + $0x518] sm:$0xff]
    %v419 = vld [vmem:[#allocation8 + $0x520] sm:$0xff]
    %v420 = vld [vmem:[#allocation8 + $0x528] sm:$0xff]
    %v421 = vld [vmem:[#allocation8 + $0x530] sm:$0xff]
    %v422 = vld [vmem:[#allocation8 + $0x538] sm:$0xff]
    %v423 = vld [vmem:[#allocation8 + $0x540] sm:$0xff]
    %v424 = vld [vmem:[#allocation8 + $0x548] sm:$0xff]
    %v425 = vld [vmem:[#allocation8 + $0x550] sm:$0xff]
    %v426 = vld [vmem:[#allocation8 + $0x558] sm:$0xff]
    %v427 = vld [vmem:[#allocation8 + $0x560] sm:$0xff]
    %v428 = vld [vmem:[#allocation8 + $0x568] sm:$0xff]
    %v429 = vld [vmem:[#allocation8 + $0x570] sm:$0xff]
    %v430 = vld [vmem:[#allocation8 + $0x578] sm:$0xff]
    %v431 = vld [vmem:[#allocation8 + $0x580] sm:$0xff]
    %v432 = vld [vmem:[#allocation8 + $0x588] sm:$0xff]
    %v433 = vld [vmem:[#allocation8 + $0x590] sm:$0xff]
    %v434 = vld [vmem:[#allocation8 + $0x598] sm:$0xff]
    %v435 = vld [vmem:[#allocation8 + $0x5a0] sm:$0xff]
    %v436 = vld [vmem:[#allocation8 + $0x5a8] sm:$0xff]
    %v437 = vld [vmem:[#allocation8 + $0x5b0] sm:$0xff]
    %v438 = vld [vmem:[#allocation8 + $0x5b8] sm:$0xff]
    %v439 = vld [vmem:[#allocation8 + $0x5c0] sm:$0xff]
    %v440 = vld [vmem:[#allocation8 + $0x5c8] sm:$0xff]
    %v441 = vld [vmem:[#allocation8 + $0x5d0] sm:$0xff]
    %v442 = vld [vmem:[#allocation8 + $0x5d8] sm:$0xff]
    %v443 = vld [vmem:[#allocation8 + $0x5e0] sm:$0xff]
    %v444 = vld [vmem:[#allocation8 + $0x5e8] sm:$0xff]
    %v445 = vld [vmem:[#allocation8 + $0x5f0] sm:$0xff]
    %v446 = vld [vmem:[#allocation8 + $0x5f8] sm:$0xff]
    %v447 = vld [vmem:[#allocation8 + $0x600] sm:$0xff]
    %v448 = vld [vmem:[#allocation8 + $0x608] sm:$0xff]
    %v449 = vld [vmem:[#allocation8 + $0x610] sm:$0xff]
    %v450 = vld [vmem:[#allocation8 + $0x618] sm:$0xff]
    %v451 = vld [vmem:[#allocation8 + $0x620] sm:$0xff]
    %v452 = vld [vmem:[#allocation8 + $0x628] sm:$0xff]
    %v453 = vld [vmem:[#allocation8 + $0x630] sm:$0xff]
    %v454 = vld [vmem:[#allocation8 + $0x638] sm:$0xff]
    %v455 = vld [vmem:[#allocation8 + $0x640] sm:$0xff]
    %v456 = vld [vmem:[#allocation8 + $0x648] sm:$0xff]
    %v457 = vld [vmem:[#allocation8 + $0x650] sm:$0xff]
    %v458 = vld [vmem:[#allocation8 + $0x658] sm:$0xff]
    %v459 = vld [vmem:[#allocation8 + $0x660] sm:$0xff]
    %v460 = vld [vmem:[#allocation8 + $0x668] sm:$0xff]
    %v461 = vld [vmem:[#allocation8 + $0x670] sm:$0xff]
    %v462 = vld [vmem:[#allocation8 + $0x678] sm:$0xff]
    %v463 = vld [vmem:[#allocation8 + $0x680] sm:$0xff]
    %v464 = vld [vmem:[#allocation8 + $0x688] sm:$0xff]
    %v465 = vld [vmem:[#allocation8 + $0x690] sm:$0xff]
    %v466 = vld [vmem:[#allocation8 + $0x698] sm:$0xff]
    %v467 = vld [vmem:[#allocation8 + $0x6a0] sm:$0xff]
    %v468 = vld [vmem:[#allocation8 + $0x6a8] sm:$0xff]
    %v469 = vld [vmem:[#allocation8 + $0x6b0] sm:$0xff]
    %v470 = vld [vmem:[#allocation8 + $0x6b8] sm:$0xff]
    %v471 = vld [vmem:[#allocation8 + $0x6c0] sm:$0xff]
    %v472 = vld [vmem:[#allocation8 + $0x6c8] sm:$0xff]
    %v473 = vld [vmem:[#allocation8 + $0x6d0] sm:$0xff]
    %v474 = vld [vmem:[#allocation8 + $0x6d8] sm:$0xff]
    %v475 = vld [vmem:[#allocation8 + $0x6e0] sm:$0xff]
    %v476 = vld [vmem:[#allocation8 + $0x6e8] sm:$0xff]
    %v477 = vld [vmem:[#allocation8 + $0x6f0] sm:$0xff]
    %v478 = vld [vmem:[#allocation8 + $0x6f8] sm:$0xff]
    %v479 = vld [vmem:[#allocation8 + $0x700] sm:$0xff]
    %v480 = vld [vmem:[#allocation8 + $0x708] sm:$0xff]
    %v481 = vld [vmem:[#allocation8 + $0x710] sm:$0xff]
    %v482 = vld [vmem:[#allocation8 + $0x718] sm:$0xff]
    %v483 = vld [vmem:[#allocation8 + $0x720] sm:$0xff]
    %v484 = vld [vmem:[#allocation8 + $0x728] sm:$0xff]
    %v485 = vld [vmem:[#allocation8 + $0x730] sm:$0xff]
    %v486 = vld [vmem:[#allocation8 + $0x738] sm:$0xff]
    %v487 = vld [vmem:[#allocation8 + $0x740] sm:$0xff]
    %v488 = vld [vmem:[#allocation8 + $0x748] sm:$0xff]
    %v489 = vld [vmem:[#allocation8 + $0x750] sm:$0xff]
    %v490 = vld [vmem:[#allocation8 + $0x758] sm:$0xff]
    %v491 = vld [vmem:[#allocation8 + $0x760] sm:$0xff]
    %v492 = vld [vmem:[#allocation8 + $0x768] sm:$0xff]
    %v493 = vld [vmem:[#allocation8 + $0x770] sm:$0xff]
    %v494 = vld [vmem:[#allocation8 + $0x778] sm:$0xff]
    %v495 = vld [vmem:[#allocation8 + $0x780] sm:$0xff]
    %v496 = vld [vmem:[#allocation8 + $0x788] sm:$0xff]
    %v497 = vld [vmem:[#allocation8 + $0x790] sm:$0xff]
    %v498 = vld [vmem:[#allocation8 + $0x798] sm:$0xff]
    %v499 = vld [vmem:[#allocation8 + $0x7a0] sm:$0xff]
    %v500 = vld [vmem:[#allocation8 + $0x7a8] sm:$0xff]
    %v501 = vld [vmem:[#allocation8 + $0x7b0] sm:$0xff]
    %v502 = vld [vmem:[#allocation8 + $0x7b8] sm:$0xff]
    %v503 = vld [vmem:[#allocation8 + $0x7c0] sm:$0xff]
    %v504 = vld [vmem:[#allocation8 + $0x7c8] sm:$0xff]
    %v505 = vld [vmem:[#allocation8 + $0x7d0] sm:$0xff]
    %v506 = vld [vmem:[#allocation8 + $0x7d8] sm:$0xff]
    %v507 = vld [vmem:[#allocation8 + $0x7e0] sm:$0xff]
    %v508 = vld [vmem:[#allocation8 + $0x7e8] sm:$0xff]
    %v509 = vld [vmem:[#allocation8 + $0x7f0] sm:$0xff]
    %v510 = vld [vmem:[#allocation8 + $0x7f8] sm:$0xff]
    %v511 = vld [vmem:[%s4] sm:$0xff]
    %v513 = vlaneseq
    %v514 = vshrl.u32 %v513, 7
    %v515 = vsub.s32 0, %v514
    %v516 = vrot.slane %v511, %v515
    %v517 = vlaneseq
    %v518 = vshrl.u32 %v517, 7
    %v519 = vsub.s32 1, %v518
    %v520 = vrot.slane %v511, %v519
    %v521 = vlaneseq
    %v522 = vshrl.u32 %v521, 7
    %v523 = vsub.s32 2, %v522
    %v524 = vrot.slane %v511, %v523
    %v525 = vlaneseq
    %v526 = vshrl.u32 %v525, 7
    %v527 = vsub.s32 3, %v526
    %v528 = vrot.slane %v511, %v527
    %v529 = vlaneseq
    %v530 = vshrl.u32 %v529, 7
    %v531 = vsub.s32 4, %v530
    %v532 = vrot.slane %v511, %v531
    %v533 = vlaneseq
    %v534 = vshrl.u32 %v533, 7
    %v535 = vsub.s32 5, %v534
    %v536 = vrot.slane %v511, %v535
    %v537 = vlaneseq
    %v538 = vshrl.u32 %v537, 7
    %v539 = vsub.s32 6, %v538
    %v540 = vrot.slane %v511, %v539
    %v541 = vlaneseq
    %v542 = vshrl.u32 %v541, 7
    %v543 = vsub.s32 7, %v542
    %v544 = vrot.slane %v511, %v543
    %v809 = vunpack.c.l.b16 %v255
    %v810 = vunpack.c.h.b16 %v255
    %v811 = vunpack.c.l.b16 %v256
    %v812 = vunpack.c.h.b16 %v256
    %v813 = vunpack.c.l.b16 %v257
    %v814 = vunpack.c.h.b16 %v257
    %v815 = vunpack.c.l.b16 %v258
    %v816 = vunpack.c.h.b16 %v258
    %v817 = vunpack.c.l.b16 %v259
    %v818 = vunpack.c.h.b16 %v259
    %v819 = vunpack.c.l.b16 %v260
    %v820 = vunpack.c.h.b16 %v260
    %v821 = vunpack.c.l.b16 %v261
    %v822 = vunpack.c.h.b16 %v261
    %v823 = vunpack.c.l.b16 %v262
    %v824 = vunpack.c.h.b16 %v262
    %v825 = vunpack.c.l.b16 %v263
    %v826 = vunpack.c.h.b16 %v263
    %v827 = vunpack.c.l.b16 %v264
    %v828 = vunpack.c.h.b16 %v264
    %v829 = vunpack.c.l.b16 %v265
    %v830 = vunpack.c.h.b16 %v265
    %v831 = vunpack.c.l.b16 %v266
    %v832 = vunpack.c.h.b16 %v266
    %v833 = vunpack.c.l.b16 %v267
    %v834 = vunpack.c.h.b16 %v267
    %v835 = vunpack.c.l.b16 %v268
    %v836 = vunpack.c.h.b16 %v268
    %v837 = vunpack.c.l.b16 %v269
    %v838 = vunpack.c.h.b16 %v269
    %v839 = vunpack.c.l.b16 %v270
    %v840 = vunpack.c.h.b16 %v270
    %v841 = vunpack.c.l.b16 %v271
    %v842 = vunpack.c.h.b16 %v271
    %v843 = vunpack.c.l.b16 %v272
    %v844 = vunpack.c.h.b16 %v272
    %v845 = vunpack.c.l.b16 %v273
    %v846 = vunpack.c.h.b16 %v273
    %v847 = vunpack.c.l.b16 %v274
    %v848 = vunpack.c.h.b16 %v274
    %v849 = vunpack.c.l.b16 %v275
    %v850 = vunpack.c.h.b16 %v275
    %v851 = vunpack.c.l.b16 %v276
    %v852 = vunpack.c.h.b16 %v276
    %v853 = vunpack.c.l.b16 %v277
    %v854 = vunpack.c.h.b16 %v277
    %v855 = vunpack.c.l.b16 %v278
    %v856 = vunpack.c.h.b16 %v278
    %v857 = vunpack.c.l.b16 %v279
    %v858 = vunpack.c.h.b16 %v279
    %v859 = vunpack.c.l.b16 %v280
    %v860 = vunpack.c.h.b16 %v280
    %v861 = vunpack.c.l.b16 %v281
    %v862 = vunpack.c.h.b16 %v281
    %v863 = vunpack.c.l.b16 %v282
    %v864 = vunpack.c.h.b16 %v282
    %v865 = vunpack.c.l.b16 %v283
    %v866 = vunpack.c.h.b16 %v283
    %v867 = vunpack.c.l.b16 %v284
    %v868 = vunpack.c.h.b16 %v284
    %v869 = vunpack.c.l.b16 %v285
    %v870 = vunpack.c.h.b16 %v285
    %v871 = vunpack.c.l.b16 %v286
    %v872 = vunpack.c.h.b16 %v286
    %v873 = vunpack.c.l.b16 %v287
    %v874 = vunpack.c.h.b16 %v287
    %v875 = vunpack.c.l.b16 %v288
    %v876 = vunpack.c.h.b16 %v288
    %v877 = vunpack.c.l.b16 %v289
    %v878 = vunpack.c.h.b16 %v289
    %v879 = vunpack.c.l.b16 %v290
    %v880 = vunpack.c.h.b16 %v290
    %v881 = vunpack.c.l.b16 %v291
    %v882 = vunpack.c.h.b16 %v291
    %v883 = vunpack.c.l.b16 %v292
    %v884 = vunpack.c.h.b16 %v292
    %v885 = vunpack.c.l.b16 %v293
    %v886 = vunpack.c.h.b16 %v293
    %v887 = vunpack.c.l.b16 %v294
    %v888 = vunpack.c.h.b16 %v294
    %v889 = vunpack.c.l.b16 %v295
    %v890 = vunpack.c.h.b16 %v295
    %v891 = vunpack.c.l.b16 %v296
    %v892 = vunpack.c.h.b16 %v296
    %v893 = vunpack.c.l.b16 %v297
    %v894 = vunpack.c.h.b16 %v297
    %v895 = vunpack.c.l.b16 %v298
    %v896 = vunpack.c.h.b16 %v298
    %v897 = vunpack.c.l.b16 %v299
    %v898 = vunpack.c.h.b16 %v299
    %v899 = vunpack.c.l.b16 %v300
    %v900 = vunpack.c.h.b16 %v300
    %v901 = vunpack.c.l.b16 %v301
    %v902 = vunpack.c.h.b16 %v301
    %v903 = vunpack.c.l.b16 %v302
    %v904 = vunpack.c.h.b16 %v302
    %v905 = vunpack.c.l.b16 %v303
    %v906 = vunpack.c.h.b16 %v303
    %v907 = vunpack.c.l.b16 %v304
    %v908 = vunpack.c.h.b16 %v304
    %v909 = vunpack.c.l.b16 %v305
    %v910 = vunpack.c.h.b16 %v305
    %v911 = vunpack.c.l.b16 %v306
    %v912 = vunpack.c.h.b16 %v306
    %v913 = vunpack.c.l.b16 %v307
    %v914 = vunpack.c.h.b16 %v307
    %v915 = vunpack.c.l.b16 %v308
    %v916 = vunpack.c.h.b16 %v308
    %v917 = vunpack.c.l.b16 %v309
    %v918 = vunpack.c.h.b16 %v309
    %v919 = vunpack.c.l.b16 %v310
    %v920 = vunpack.c.h.b16 %v310
    %v921 = vunpack.c.l.b16 %v311
    %v922 = vunpack.c.h.b16 %v311
    %v923 = vunpack.c.l.b16 %v312
    %v924 = vunpack.c.h.b16 %v312
    %v925 = vunpack.c.l.b16 %v313
    %v926 = vunpack.c.h.b16 %v313
    %v927 = vunpack.c.l.b16 %v314
    %v928 = vunpack.c.h.b16 %v314
    %v929 = vunpack.c.l.b16 %v315
    %v930 = vunpack.c.h.b16 %v315
    %v931 = vunpack.c.l.b16 %v316
    %v932 = vunpack.c.h.b16 %v316
    %v933 = vunpack.c.l.b16 %v317
    %v934 = vunpack.c.h.b16 %v317
    %v935 = vunpack.c.l.b16 %v318
    %v936 = vunpack.c.h.b16 %v318
    %v937 = vunpack.c.l.b16 %v319
    %v938 = vunpack.c.h.b16 %v319
    %v939 = vunpack.c.l.b16 %v320
    %v940 = vunpack.c.h.b16 %v320
    %v941 = vunpack.c.l.b16 %v321
    %v942 = vunpack.c.h.b16 %v321
    %v943 = vunpack.c.l.b16 %v322
    %v944 = vunpack.c.h.b16 %v322
    %v945 = vunpack.c.l.b16 %v323
    %v946 = vunpack.c.h.b16 %v323
    %v947 = vunpack.c.l.b16 %v324
    %v948 = vunpack.c.h.b16 %v324
    %v949 = vunpack.c.l.b16 %v325
    %v950 = vunpack.c.h.b16 %v325
    %v951 = vunpack.c.l.b16 %v326
    %v952 = vunpack.c.h.b16 %v326
    %v953 = vunpack.c.l.b16 %v327
    %v954 = vunpack.c.h.b16 %v327
    %v955 = vunpack.c.l.b16 %v328
    %v956 = vunpack.c.h.b16 %v328
    %v957 = vunpack.c.l.b16 %v329
    %v958 = vunpack.c.h.b16 %v329
    %v959 = vunpack.c.l.b16 %v330
    %v960 = vunpack.c.h.b16 %v330
    %v961 = vunpack.c.l.b16 %v331
    %v962 = vunpack.c.h.b16 %v331
    %v963 = vunpack.c.l.b16 %v332
    %v964 = vunpack.c.h.b16 %v332
    %v965 = vunpack.c.l.b16 %v333
    %v966 = vunpack.c.h.b16 %v333
    %v967 = vunpack.c.l.b16 %v334
    %v968 = vunpack.c.h.b16 %v334
    %v969 = vunpack.c.l.b16 %v335
    %v970 = vunpack.c.h.b16 %v335
    %v971 = vunpack.c.l.b16 %v336
    %v972 = vunpack.c.h.b16 %v336
    %v973 = vunpack.c.l.b16 %v337
    %v974 = vunpack.c.h.b16 %v337
    %v975 = vunpack.c.l.b16 %v338
    %v976 = vunpack.c.h.b16 %v338
    %v977 = vunpack.c.l.b16 %v339
    %v978 = vunpack.c.h.b16 %v339
    %v979 = vunpack.c.l.b16 %v340
    %v980 = vunpack.c.h.b16 %v340
    %v981 = vunpack.c.l.b16 %v341
    %v982 = vunpack.c.h.b16 %v341
    %v983 = vunpack.c.l.b16 %v342
    %v984 = vunpack.c.h.b16 %v342
    %v985 = vunpack.c.l.b16 %v343
    %v986 = vunpack.c.h.b16 %v343
    %v987 = vunpack.c.l.b16 %v344
    %v988 = vunpack.c.h.b16 %v344
    %v989 = vunpack.c.l.b16 %v345
    %v990 = vunpack.c.h.b16 %v345
    %v991 = vunpack.c.l.b16 %v346
    %v992 = vunpack.c.h.b16 %v346
    %v993 = vunpack.c.l.b16 %v347
    %v994 = vunpack.c.h.b16 %v347
    %v995 = vunpack.c.l.b16 %v348
    %v996 = vunpack.c.h.b16 %v348
    %v997 = vunpack.c.l.b16 %v349
    %v998 = vunpack.c.h.b16 %v349
    %v999 = vunpack.c.l.b16 %v350
    %v1000 = vunpack.c.h.b16 %v350
    %v1001 = vunpack.c.l.b16 %v351
    %v1002 = vunpack.c.h.b16 %v351
    %v1003 = vunpack.c.l.b16 %v352
    %v1004 = vunpack.c.h.b16 %v352
    %v1005 = vunpack.c.l.b16 %v353
    %v1006 = vunpack.c.h.b16 %v353
    %v1007 = vunpack.c.l.b16 %v354
    %v1008 = vunpack.c.h.b16 %v354
    %v1009 = vunpack.c.l.b16 %v355
    %v1010 = vunpack.c.h.b16 %v355
    %v1011 = vunpack.c.l.b16 %v356
    %v1012 = vunpack.c.h.b16 %v356
    %v1013 = vunpack.c.l.b16 %v357
    %v1014 = vunpack.c.h.b16 %v357
    %v1015 = vunpack.c.l.b16 %v358
    %v1016 = vunpack.c.h.b16 %v358
    %v1017 = vunpack.c.l.b16 %v359
    %v1018 = vunpack.c.h.b16 %v359
    %v1019 = vunpack.c.l.b16 %v360
    %v1020 = vunpack.c.h.b16 %v360
    %v1021 = vunpack.c.l.b16 %v361
    %v1022 = vunpack.c.h.b16 %v361
    %v1023 = vunpack.c.l.b16 %v362
    %v1024 = vunpack.c.h.b16 %v362
    %v1025 = vunpack.c.l.b16 %v363
    %v1026 = vunpack.c.h.b16 %v363
    %v1027 = vunpack.c.l.b16 %v364
    %v1028 = vunpack.c.h.b16 %v364
    %v1029 = vunpack.c.l.b16 %v365
    %v1030 = vunpack.c.h.b16 %v365
    %v1031 = vunpack.c.l.b16 %v366
    %v1032 = vunpack.c.h.b16 %v366
    %v1033 = vunpack.c.l.b16 %v367
    %v1034 = vunpack.c.h.b16 %v367
    %v1035 = vunpack.c.l.b16 %v368
    %v1036 = vunpack.c.h.b16 %v368
    %v1037 = vunpack.c.l.b16 %v369
    %v1038 = vunpack.c.h.b16 %v369
    %v1039 = vunpack.c.l.b16 %v370
    %v1040 = vunpack.c.h.b16 %v370
    %v1041 = vunpack.c.l.b16 %v371
    %v1042 = vunpack.c.h.b16 %v371
    %v1043 = vunpack.c.l.b16 %v372
    %v1044 = vunpack.c.h.b16 %v372
    %v1045 = vunpack.c.l.b16 %v373
    %v1046 = vunpack.c.h.b16 %v373
    %v1047 = vunpack.c.l.b16 %v374
    %v1048 = vunpack.c.h.b16 %v374
    %v1049 = vunpack.c.l.b16 %v375
    %v1050 = vunpack.c.h.b16 %v375
    %v1051 = vunpack.c.l.b16 %v376
    %v1052 = vunpack.c.h.b16 %v376
    %v1053 = vunpack.c.l.b16 %v377
    %v1054 = vunpack.c.h.b16 %v377
    %v1055 = vunpack.c.l.b16 %v378
    %v1056 = vunpack.c.h.b16 %v378
    %v1057 = vunpack.c.l.b16 %v379
    %v1058 = vunpack.c.h.b16 %v379
    %v1059 = vunpack.c.l.b16 %v380
    %v1060 = vunpack.c.h.b16 %v380
    %v1061 = vunpack.c.l.b16 %v381
    %v1062 = vunpack.c.h.b16 %v381
    %v1063 = vunpack.c.l.b16 %v382
    %v1064 = vunpack.c.h.b16 %v382
    %v1065 = vunpack.c.l.b16 %v383
    %v1066 = vunpack.c.h.b16 %v383
    %v1067 = vunpack.c.l.b16 %v384
    %v1068 = vunpack.c.h.b16 %v384
    %v1069 = vunpack.c.l.b16 %v385
    %v1070 = vunpack.c.h.b16 %v385
    %v1071 = vunpack.c.l.b16 %v386
    %v1072 = vunpack.c.h.b16 %v386
    %v1073 = vunpack.c.l.b16 %v387
    %v1074 = vunpack.c.h.b16 %v387
    %v1075 = vunpack.c.l.b16 %v388
    %v1076 = vunpack.c.h.b16 %v388
    %v1077 = vunpack.c.l.b16 %v389
    %v1078 = vunpack.c.h.b16 %v389
    %v1079 = vunpack.c.l.b16 %v390
    %v1080 = vunpack.c.h.b16 %v390
    %v1081 = vunpack.c.l.b16 %v391
    %v1082 = vunpack.c.h.b16 %v391
    %v1083 = vunpack.c.l.b16 %v392
    %v1084 = vunpack.c.h.b16 %v392
    %v1085 = vunpack.c.l.b16 %v393
    %v1086 = vunpack.c.h.b16 %v393
    %v1087 = vunpack.c.l.b16 %v394
    %v1088 = vunpack.c.h.b16 %v394
    %v1089 = vunpack.c.l.b16 %v395
    %v1090 = vunpack.c.h.b16 %v395
    %v1091 = vunpack.c.l.b16 %v396
    %v1092 = vunpack.c.h.b16 %v396
    %v1093 = vunpack.c.l.b16 %v397
    %v1094 = vunpack.c.h.b16 %v397
    %v1095 = vunpack.c.l.b16 %v398
    %v1096 = vunpack.c.h.b16 %v398
    %v1097 = vunpack.c.l.b16 %v399
    %v1098 = vunpack.c.h.b16 %v399
    %v1099 = vunpack.c.l.b16 %v400
    %v1100 = vunpack.c.h.b16 %v400
    %v1101 = vunpack.c.l.b16 %v401
    %v1102 = vunpack.c.h.b16 %v401
    %v1103 = vunpack.c.l.b16 %v402
    %v1104 = vunpack.c.h.b16 %v402
    %v1105 = vunpack.c.l.b16 %v403
    %v1106 = vunpack.c.h.b16 %v403
    %v1107 = vunpack.c.l.b16 %v404
    %v1108 = vunpack.c.h.b16 %v404
    %v1109 = vunpack.c.l.b16 %v405
    %v1110 = vunpack.c.h.b16 %v405
    %v1111 = vunpack.c.l.b16 %v406
    %v1112 = vunpack.c.h.b16 %v406
    %v1113 = vunpack.c.l.b16 %v407
    %v1114 = vunpack.c.h.b16 %v407
    %v1115 = vunpack.c.l.b16 %v408
    %v1116 = vunpack.c.h.b16 %v408
    %v1117 = vunpack.c.l.b16 %v409
    %v1118 = vunpack.c.h.b16 %v409
    %v1119 = vunpack.c.l.b16 %v410
    %v1120 = vunpack.c.h.b16 %v410
    %v1121 = vunpack.c.l.b16 %v411
    %v1122 = vunpack.c.h.b16 %v411
    %v1123 = vunpack.c.l.b16 %v412
    %v1124 = vunpack.c.h.b16 %v412
    %v1125 = vunpack.c.l.b16 %v413
    %v1126 = vunpack.c.h.b16 %v413
    %v1127 = vunpack.c.l.b16 %v414
    %v1128 = vunpack.c.h.b16 %v414
    %v1129 = vunpack.c.l.b16 %v415
    %v1130 = vunpack.c.h.b16 %v415
    %v1131 = vunpack.c.l.b16 %v416
    %v1132 = vunpack.c.h.b16 %v416
    %v1133 = vunpack.c.l.b16 %v417
    %v1134 = vunpack.c.h.b16 %v417
    %v1135 = vunpack.c.l.b16 %v418
    %v1136 = vunpack.c.h.b16 %v418
    %v1137 = vunpack.c.l.b16 %v419
    %v1138 = vunpack.c.h.b16 %v419
    %v1139 = vunpack.c.l.b16 %v420
    %v1140 = vunpack.c.h.b16 %v420
    %v1141 = vunpack.c.l.b16 %v421
    %v1142 = vunpack.c.h.b16 %v421
    %v1143 = vunpack.c.l.b16 %v422
    %v1144 = vunpack.c.h.b16 %v422
    %v1145 = vunpack.c.l.b16 %v423
    %v1146 = vunpack.c.h.b16 %v423
    %v1147 = vunpack.c.l.b16 %v424
    %v1148 = vunpack.c.h.b16 %v424
    %v1149 = vunpack.c.l.b16 %v425
    %v1150 = vunpack.c.h.b16 %v425
    %v1151 = vunpack.c.l.b16 %v426
    %v1152 = vunpack.c.h.b16 %v426
    %v1153 = vunpack.c.l.b16 %v427
    %v1154 = vunpack.c.h.b16 %v427
    %v1155 = vunpack.c.l.b16 %v428
    %v1156 = vunpack.c.h.b16 %v428
    %v1157 = vunpack.c.l.b16 %v429
    %v1158 = vunpack.c.h.b16 %v429
    %v1159 = vunpack.c.l.b16 %v430
    %v1160 = vunpack.c.h.b16 %v430
    %v1161 = vunpack.c.l.b16 %v431
    %v1162 = vunpack.c.h.b16 %v431
    %v1163 = vunpack.c.l.b16 %v432
    %v1164 = vunpack.c.h.b16 %v432
    %v1165 = vunpack.c.l.b16 %v433
    %v1166 = vunpack.c.h.b16 %v433
    %v1167 = vunpack.c.l.b16 %v434
    %v1168 = vunpack.c.h.b16 %v434
    %v1169 = vunpack.c.l.b16 %v435
    %v1170 = vunpack.c.h.b16 %v435
    %v1171 = vunpack.c.l.b16 %v436
    %v1172 = vunpack.c.h.b16 %v436
    %v1173 = vunpack.c.l.b16 %v437
    %v1174 = vunpack.c.h.b16 %v437
    %v1175 = vunpack.c.l.b16 %v438
    %v1176 = vunpack.c.h.b16 %v438
    %v1177 = vunpack.c.l.b16 %v439
    %v1178 = vunpack.c.h.b16 %v439
    %v1179 = vunpack.c.l.b16 %v440
    %v1180 = vunpack.c.h.b16 %v440
    %v1181 = vunpack.c.l.b16 %v441
    %v1182 = vunpack.c.h.b16 %v441
    %v1183 = vunpack.c.l.b16 %v442
    %v1184 = vunpack.c.h.b16 %v442
    %v1185 = vunpack.c.l.b16 %v443
    %v1186 = vunpack.c.h.b16 %v443
    %v1187 = vunpack.c.l.b16 %v444
    %v1188 = vunpack.c.h.b16 %v444
    %v1189 = vunpack.c.l.b16 %v445
    %v1190 = vunpack.c.h.b16 %v445
    %v1191 = vunpack.c.l.b16 %v446
    %v1192 = vunpack.c.h.b16 %v446
    %v1193 = vunpack.c.l.b16 %v447
    %v1194 = vunpack.c.h.b16 %v447
    %v1195 = vunpack.c.l.b16 %v448
    %v1196 = vunpack.c.h.b16 %v448
    %v1197 = vunpack.c.l.b16 %v449
    %v1198 = vunpack.c.h.b16 %v449
    %v1199 = vunpack.c.l.b16 %v450
    %v1200 = vunpack.c.h.b16 %v450
    %v1201 = vunpack.c.l.b16 %v451
    %v1202 = vunpack.c.h.b16 %v451
    %v1203 = vunpack.c.l.b16 %v452
    %v1204 = vunpack.c.h.b16 %v452
    %v1205 = vunpack.c.l.b16 %v453
    %v1206 = vunpack.c.h.b16 %v453
    %v1207 = vunpack.c.l.b16 %v454
    %v1208 = vunpack.c.h.b16 %v454
    %v1209 = vunpack.c.l.b16 %v455
    %v1210 = vunpack.c.h.b16 %v455
    %v1211 = vunpack.c.l.b16 %v456
    %v1212 = vunpack.c.h.b16 %v456
    %v1213 = vunpack.c.l.b16 %v457
    %v1214 = vunpack.c.h.b16 %v457
    %v1215 = vunpack.c.l.b16 %v458
    %v1216 = vunpack.c.h.b16 %v458
    %v1217 = vunpack.c.l.b16 %v459
    %v1218 = vunpack.c.h.b16 %v459
    %v1219 = vunpack.c.l.b16 %v460
    %v1220 = vunpack.c.h.b16 %v460
    %v1221 = vunpack.c.l.b16 %v461
    %v1222 = vunpack.c.h.b16 %v461
    %v1223 = vunpack.c.l.b16 %v462
    %v1224 = vunpack.c.h.b16 %v462
    %v1225 = vunpack.c.l.b16 %v463
    %v1226 = vunpack.c.h.b16 %v463
    %v1227 = vunpack.c.l.b16 %v464
    %v1228 = vunpack.c.h.b16 %v464
    %v1229 = vunpack.c.l.b16 %v465
    %v1230 = vunpack.c.h.b16 %v465
    %v1231 = vunpack.c.l.b16 %v466
    %v1232 = vunpack.c.h.b16 %v466
    %v1233 = vunpack.c.l.b16 %v467
    %v1234 = vunpack.c.h.b16 %v467
    %v1235 = vunpack.c.l.b16 %v468
    %v1236 = vunpack.c.h.b16 %v468
    %v1237 = vunpack.c.l.b16 %v469
    %v1238 = vunpack.c.h.b16 %v469
    %v1239 = vunpack.c.l.b16 %v470
    %v1240 = vunpack.c.h.b16 %v470
    %v1241 = vunpack.c.l.b16 %v471
    %v1242 = vunpack.c.h.b16 %v471
    %v1243 = vunpack.c.l.b16 %v472
    %v1244 = vunpack.c.h.b16 %v472
    %v1245 = vunpack.c.l.b16 %v473
    %v1246 = vunpack.c.h.b16 %v473
    %v1247 = vunpack.c.l.b16 %v474
    %v1248 = vunpack.c.h.b16 %v474
    %v1249 = vunpack.c.l.b16 %v475
    %v1250 = vunpack.c.h.b16 %v475
    %v1251 = vunpack.c.l.b16 %v476
    %v1252 = vunpack.c.h.b16 %v476
    %v1253 = vunpack.c.l.b16 %v477
    %v1254 = vunpack.c.h.b16 %v477
    %v1255 = vunpack.c.l.b16 %v478
    %v1256 = vunpack.c.h.b16 %v478
    %v1257 = vunpack.c.l.b16 %v479
    %v1258 = vunpack.c.h.b16 %v479
    %v1259 = vunpack.c.l.b16 %v480
    %v1260 = vunpack.c.h.b16 %v480
    %v1261 = vunpack.c.l.b16 %v481
    %v1262 = vunpack.c.h.b16 %v481
    %v1263 = vunpack.c.l.b16 %v482
    %v1264 = vunpack.c.h.b16 %v482
    %v1265 = vunpack.c.l.b16 %v483
    %v1266 = vunpack.c.h.b16 %v483
    %v1267 = vunpack.c.l.b16 %v484
    %v1268 = vunpack.c.h.b16 %v484
    %v1269 = vunpack.c.l.b16 %v485
    %v1270 = vunpack.c.h.b16 %v485
    %v1271 = vunpack.c.l.b16 %v486
    %v1272 = vunpack.c.h.b16 %v486
    %v1273 = vunpack.c.l.b16 %v487
    %v1274 = vunpack.c.h.b16 %v487
    %v1275 = vunpack.c.l.b16 %v488
    %v1276 = vunpack.c.h.b16 %v488
    %v1277 = vunpack.c.l.b16 %v489
    %v1278 = vunpack.c.h.b16 %v489
    %v1279 = vunpack.c.l.b16 %v490
    %v1280 = vunpack.c.h.b16 %v490
    %v1281 = vunpack.c.l.b16 %v491
    %v1282 = vunpack.c.h.b16 %v491
    %v1283 = vunpack.c.l.b16 %v492
    %v1284 = vunpack.c.h.b16 %v492
    %v1285 = vunpack.c.l.b16 %v493
    %v1286 = vunpack.c.h.b16 %v493
    %v1287 = vunpack.c.l.b16 %v494
    %v1288 = vunpack.c.h.b16 %v494
    %v1289 = vunpack.c.l.b16 %v495
    %v1290 = vunpack.c.h.b16 %v495
    %v1291 = vunpack.c.l.b16 %v496
    %v1292 = vunpack.c.h.b16 %v496
    %v1293 = vunpack.c.l.b16 %v497
    %v1294 = vunpack.c.h.b16 %v497
    %v1295 = vunpack.c.l.b16 %v498
    %v1296 = vunpack.c.h.b16 %v498
    %v1297 = vunpack.c.l.b16 %v499
    %v1298 = vunpack.c.h.b16 %v499
    %v1299 = vunpack.c.l.b16 %v500
    %v1300 = vunpack.c.h.b16 %v500
    %v1301 = vunpack.c.l.b16 %v501
    %v1302 = vunpack.c.h.b16 %v501
    %v1303 = vunpack.c.l.b16 %v502
    %v1304 = vunpack.c.h.b16 %v502
    %v1305 = vunpack.c.l.b16 %v503
    %v1306 = vunpack.c.h.b16 %v503
    %v1307 = vunpack.c.l.b16 %v504
    %v1308 = vunpack.c.h.b16 %v504
    %v1309 = vunpack.c.l.b16 %v505
    %v1310 = vunpack.c.h.b16 %v505
    %v1311 = vunpack.c.l.b16 %v506
    %v1312 = vunpack.c.h.b16 %v506
    %v1313 = vunpack.c.l.b16 %v507
    %v1314 = vunpack.c.h.b16 %v507
    %v1315 = vunpack.c.l.b16 %v508
    %v1316 = vunpack.c.h.b16 %v508
    %v1317 = vunpack.c.l.b16 %v509
    %v1318 = vunpack.c.h.b16 %v509
    %v1319 = vunpack.c.l.b16 %v510
    %v1320 = vunpack.c.h.b16 %v510
    %v1321 = vpack.c.b16 %v817, %v809
    %v1322 = vpack.c.b16 %v818, %v810
    %v1323 = vpack.c.b16 %v819, %v811
    %v1324 = vpack.c.b16 %v820, %v812
    %v1325 = vpack.c.b16 %v821, %v813
    %v1326 = vpack.c.b16 %v822, %v814
    %v1327 = vpack.c.b16 %v823, %v815
    %v1328 = vpack.c.b16 %v824, %v816
    %v1329 = vpack.c.b16 %v833, %v825
    %v1330 = vpack.c.b16 %v834, %v826
    %v1331 = vpack.c.b16 %v835, %v827
    %v1332 = vpack.c.b16 %v836, %v828
    %v1333 = vpack.c.b16 %v837, %v829
    %v1334 = vpack.c.b16 %v838, %v830
    %v1335 = vpack.c.b16 %v839, %v831
    %v1336 = vpack.c.b16 %v840, %v832
    %v1337 = vpack.c.b16 %v849, %v841
    %v1338 = vpack.c.b16 %v850, %v842
    %v1339 = vpack.c.b16 %v851, %v843
    %v1340 = vpack.c.b16 %v852, %v844
    %v1341 = vpack.c.b16 %v853, %v845
    %v1342 = vpack.c.b16 %v854, %v846
    %v1343 = vpack.c.b16 %v855, %v847
    %v1344 = vpack.c.b16 %v856, %v848
    %v1345 = vpack.c.b16 %v865, %v857
    %v1346 = vpack.c.b16 %v866, %v858
    %v1347 = vpack.c.b16 %v867, %v859
    %v1348 = vpack.c.b16 %v868, %v860
    %v1349 = vpack.c.b16 %v869, %v861
    %v1350 = vpack.c.b16 %v870, %v862
    %v1351 = vpack.c.b16 %v871, %v863
    %v1352 = vpack.c.b16 %v872, %v864
    %v1353 = vpack.c.b16 %v881, %v873
    %v1354 = vpack.c.b16 %v882, %v874
    %v1355 = vpack.c.b16 %v883, %v875
    %v1356 = vpack.c.b16 %v884, %v876
    %v1357 = vpack.c.b16 %v885, %v877
    %v1358 = vpack.c.b16 %v886, %v878
    %v1359 = vpack.c.b16 %v887, %v879
    %v1360 = vpack.c.b16 %v888, %v880
    %v1361 = vpack.c.b16 %v897, %v889
    %v1362 = vpack.c.b16 %v898, %v890
    %v1363 = vpack.c.b16 %v899, %v891
    %v1364 = vpack.c.b16 %v900, %v892
    %v1365 = vpack.c.b16 %v901, %v893
    %v1366 = vpack.c.b16 %v902, %v894
    %v1367 = vpack.c.b16 %v903, %v895
    %v1368 = vpack.c.b16 %v904, %v896
    %v1369 = vpack.c.b16 %v913, %v905
    %v1370 = vpack.c.b16 %v914, %v906
    %v1371 = vpack.c.b16 %v915, %v907
    %v1372 = vpack.c.b16 %v916, %v908
    %v1373 = vpack.c.b16 %v917, %v909
    %v1374 = vpack.c.b16 %v918, %v910
    %v1375 = vpack.c.b16 %v919, %v911
    %v1376 = vpack.c.b16 %v920, %v912
    %v1377 = vpack.c.b16 %v929, %v921
    %v1378 = vpack.c.b16 %v930, %v922
    %v1379 = vpack.c.b16 %v931, %v923
    %v1380 = vpack.c.b16 %v932, %v924
    %v1381 = vpack.c.b16 %v933, %v925
    %v1382 = vpack.c.b16 %v934, %v926
    %v1383 = vpack.c.b16 %v935, %v927
    %v1384 = vpack.c.b16 %v936, %v928
    %v1385 = vpack.c.b16 %v945, %v937
    %v1386 = vpack.c.b16 %v946, %v938
    %v1387 = vpack.c.b16 %v947, %v939
    %v1388 = vpack.c.b16 %v948, %v940
    %v1389 = vpack.c.b16 %v949, %v941
    %v1390 = vpack.c.b16 %v950, %v942
    %v1391 = vpack.c.b16 %v951, %v943
    %v1392 = vpack.c.b16 %v952, %v944
    %v1393 = vpack.c.b16 %v961, %v953
    %v1394 = vpack.c.b16 %v962, %v954
    %v1395 = vpack.c.b16 %v963, %v955
    %v1396 = vpack.c.b16 %v964, %v956
    %v1397 = vpack.c.b16 %v965, %v957
    %v1398 = vpack.c.b16 %v966, %v958
    %v1399 = vpack.c.b16 %v967, %v959
    %v1400 = vpack.c.b16 %v968, %v960
    %v1401 = vpack.c.b16 %v977, %v969
    %v1402 = vpack.c.b16 %v978, %v970
    %v1403 = vpack.c.b16 %v979, %v971
    %v1404 = vpack.c.b16 %v980, %v972
    %v1405 = vpack.c.b16 %v981, %v973
    %v1406 = vpack.c.b16 %v982, %v974
    %v1407 = vpack.c.b16 %v983, %v975
    %v1408 = vpack.c.b16 %v984, %v976
    %v1409 = vpack.c.b16 %v993, %v985
    %v1410 = vpack.c.b16 %v994, %v986
    %v1411 = vpack.c.b16 %v995, %v987
    %v1412 = vpack.c.b16 %v996, %v988
    %v1413 = vpack.c.b16 %v997, %v989
    %v1414 = vpack.c.b16 %v998, %v990
    %v1415 = vpack.c.b16 %v999, %v991
    %v1416 = vpack.c.b16 %v1000, %v992
    %v1417 = vpack.c.b16 %v1009, %v1001
    %v1418 = vpack.c.b16 %v1010, %v1002
    %v1419 = vpack.c.b16 %v1011, %v1003
    %v1420 = vpack.c.b16 %v1012, %v1004
    %v1421 = vpack.c.b16 %v1013, %v1005
    %v1422 = vpack.c.b16 %v1014, %v1006
    %v1423 = vpack.c.b16 %v1015, %v1007
    %v1424 = vpack.c.b16 %v1016, %v1008
    %v1425 = vpack.c.b16 %v1025, %v1017
    %v1426 = vpack.c.b16 %v1026, %v1018
    %v1427 = vpack.c.b16 %v1027, %v1019
    %v1428 = vpack.c.b16 %v1028, %v1020
    %v1429 = vpack.c.b16 %v1029, %v1021
    %v1430 = vpack.c.b16 %v1030, %v1022
    %v1431 = vpack.c.b16 %v1031, %v1023
    %v1432 = vpack.c.b16 %v1032, %v1024
    %v1433 = vpack.c.b16 %v1041, %v1033
    %v1434 = vpack.c.b16 %v1042, %v1034
    %v1435 = vpack.c.b16 %v1043, %v1035
    %v1436 = vpack.c.b16 %v1044, %v1036
    %v1437 = vpack.c.b16 %v1045, %v1037
    %v1438 = vpack.c.b16 %v1046, %v1038
    %v1439 = vpack.c.b16 %v1047, %v1039
    %v1440 = vpack.c.b16 %v1048, %v1040
    %v1441 = vpack.c.b16 %v1057, %v1049
    %v1442 = vpack.c.b16 %v1058, %v1050
    %v1443 = vpack.c.b16 %v1059, %v1051
    %v1444 = vpack.c.b16 %v1060, %v1052
    %v1445 = vpack.c.b16 %v1061, %v1053
    %v1446 = vpack.c.b16 %v1062, %v1054
    %v1447 = vpack.c.b16 %v1063, %v1055
    %v1448 = vpack.c.b16 %v1064, %v1056
    %v1449 = vpack.c.b16 %v1073, %v1065
    %v1450 = vpack.c.b16 %v1074, %v1066
    %v1451 = vpack.c.b16 %v1075, %v1067
    %v1452 = vpack.c.b16 %v1076, %v1068
    %v1453 = vpack.c.b16 %v1077, %v1069
    %v1454 = vpack.c.b16 %v1078, %v1070
    %v1455 = vpack.c.b16 %v1079, %v1071
    %v1456 = vpack.c.b16 %v1080, %v1072
    %v1457 = vpack.c.b16 %v1089, %v1081
    %v1458 = vpack.c.b16 %v1090, %v1082
    %v1459 = vpack.c.b16 %v1091, %v1083
    %v1460 = vpack.c.b16 %v1092, %v1084
    %v1461 = vpack.c.b16 %v1093, %v1085
    %v1462 = vpack.c.b16 %v1094, %v1086
    %v1463 = vpack.c.b16 %v1095, %v1087
    %v1464 = vpack.c.b16 %v1096, %v1088
    %v1465 = vpack.c.b16 %v1105, %v1097
    %v1466 = vpack.c.b16 %v1106, %v1098
    %v1467 = vpack.c.b16 %v1107, %v1099
    %v1468 = vpack.c.b16 %v1108, %v1100
    %v1469 = vpack.c.b16 %v1109, %v1101
    %v1470 = vpack.c.b16 %v1110, %v1102
    %v1471 = vpack.c.b16 %v1111, %v1103
    %v1472 = vpack.c.b16 %v1112, %v1104
    %v1473 = vpack.c.b16 %v1121, %v1113
    %v1474 = vpack.c.b16 %v1122, %v1114
    %v1475 = vpack.c.b16 %v1123, %v1115
    %v1476 = vpack.c.b16 %v1124, %v1116
    %v1477 = vpack.c.b16 %v1125, %v1117
    %v1478 = vpack.c.b16 %v1126, %v1118
    %v1479 = vpack.c.b16 %v1127, %v1119
    %v1480 = vpack.c.b16 %v1128, %v1120
    %v1481 = vpack.c.b16 %v1137, %v1129
    %v1482 = vpack.c.b16 %v1138, %v1130
    %v1483 = vpack.c.b16 %v1139, %v1131
    %v1484 = vpack.c.b16 %v1140, %v1132
    %v1485 = vpack.c.b16 %v1141, %v1133
    %v1486 = vpack.c.b16 %v1142, %v1134
    %v1487 = vpack.c.b16 %v1143, %v1135
    %v1488 = vpack.c.b16 %v1144, %v1136
    %v1489 = vpack.c.b16 %v1153, %v1145
    %v1490 = vpack.c.b16 %v1154, %v1146
    %v1491 = vpack.c.b16 %v1155, %v1147
    %v1492 = vpack.c.b16 %v1156, %v1148
    %v1493 = vpack.c.b16 %v1157, %v1149
    %v1494 = vpack.c.b16 %v1158, %v1150
    %v1495 = vpack.c.b16 %v1159, %v1151
    %v1496 = vpack.c.b16 %v1160, %v1152
    %v1497 = vpack.c.b16 %v1169, %v1161
    %v1498 = vpack.c.b16 %v1170, %v1162
    %v1499 = vpack.c.b16 %v1171, %v1163
    %v1500 = vpack.c.b16 %v1172, %v1164
    %v1501 = vpack.c.b16 %v1173, %v1165
    %v1502 = vpack.c.b16 %v1174, %v1166
    %v1503 = vpack.c.b16 %v1175, %v1167
    %v1504 = vpack.c.b16 %v1176, %v1168
    %v1505 = vpack.c.b16 %v1185, %v1177
    %v1506 = vpack.c.b16 %v1186, %v1178
    %v1507 = vpack.c.b16 %v1187, %v1179
    %v1508 = vpack.c.b16 %v1188, %v1180
    %v1509 = vpack.c.b16 %v1189, %v1181
    %v1510 = vpack.c.b16 %v1190, %v1182
    %v1511 = vpack.c.b16 %v1191, %v1183
    %v1512 = vpack.c.b16 %v1192, %v1184
    %v1513 = vpack.c.b16 %v1201, %v1193
    %v1514 = vpack.c.b16 %v1202, %v1194
    %v1515 = vpack.c.b16 %v1203, %v1195
    %v1516 = vpack.c.b16 %v1204, %v1196
    %v1517 = vpack.c.b16 %v1205, %v1197
    %v1518 = vpack.c.b16 %v1206, %v1198
    %v1519 = vpack.c.b16 %v1207, %v1199
    %v1520 = vpack.c.b16 %v1208, %v1200
    %v1521 = vpack.c.b16 %v1217, %v1209
    %v1522 = vpack.c.b16 %v1218, %v1210
    %v1523 = vpack.c.b16 %v1219, %v1211
    %v1524 = vpack.c.b16 %v1220, %v1212
    %v1525 = vpack.c.b16 %v1221, %v1213
    %v1526 = vpack.c.b16 %v1222, %v1214
    %v1527 = vpack.c.b16 %v1223, %v1215
    %v1528 = vpack.c.b16 %v1224, %v1216
    %v1529 = vpack.c.b16 %v1233, %v1225
    %v1530 = vpack.c.b16 %v1234, %v1226
    %v1531 = vpack.c.b16 %v1235, %v1227
    %v1532 = vpack.c.b16 %v1236, %v1228
    %v1533 = vpack.c.b16 %v1237, %v1229
    %v1534 = vpack.c.b16 %v1238, %v1230
    %v1535 = vpack.c.b16 %v1239, %v1231
    %v1536 = vpack.c.b16 %v1240, %v1232
    %v1537 = vpack.c.b16 %v1249, %v1241
    %v1538 = vpack.c.b16 %v1250, %v1242
    %v1539 = vpack.c.b16 %v1251, %v1243
    %v1540 = vpack.c.b16 %v1252, %v1244
    %v1541 = vpack.c.b16 %v1253, %v1245
    %v1542 = vpack.c.b16 %v1254, %v1246
    %v1543 = vpack.c.b16 %v1255, %v1247
    %v1544 = vpack.c.b16 %v1256, %v1248
    %v1545 = vpack.c.b16 %v1265, %v1257
    %v1546 = vpack.c.b16 %v1266, %v1258
    %v1547 = vpack.c.b16 %v1267, %v1259
    %v1548 = vpack.c.b16 %v1268, %v1260
    %v1549 = vpack.c.b16 %v1269, %v1261
    %v1550 = vpack.c.b16 %v1270, %v1262
    %v1551 = vpack.c.b16 %v1271, %v1263
    %v1552 = vpack.c.b16 %v1272, %v1264
    %v1553 = vpack.c.b16 %v1281, %v1273
    %v1554 = vpack.c.b16 %v1282, %v1274
    %v1555 = vpack.c.b16 %v1283, %v1275
    %v1556 = vpack.c.b16 %v1284, %v1276
    %v1557 = vpack.c.b16 %v1285, %v1277
    %v1558 = vpack.c.b16 %v1286, %v1278
    %v1559 = vpack.c.b16 %v1287, %v1279
    %v1560 = vpack.c.b16 %v1288, %v1280
    %v1561 = vpack.c.b16 %v1297, %v1289
    %v1562 = vpack.c.b16 %v1298, %v1290
    %v1563 = vpack.c.b16 %v1299, %v1291
    %v1564 = vpack.c.b16 %v1300, %v1292
    %v1565 = vpack.c.b16 %v1301, %v1293
    %v1566 = vpack.c.b16 %v1302, %v1294
    %v1567 = vpack.c.b16 %v1303, %v1295
    %v1568 = vpack.c.b16 %v1304, %v1296
    %v1569 = vpack.c.b16 %v1313, %v1305
    %v1570 = vpack.c.b16 %v1314, %v1306
    %v1571 = vpack.c.b16 %v1315, %v1307
    %v1572 = vpack.c.b16 %v1316, %v1308
    %v1573 = vpack.c.b16 %v1317, %v1309
    %v1574 = vpack.c.b16 %v1318, %v1310
    %v1575 = vpack.c.b16 %v1319, %v1311
    %v1576 = vpack.c.b16 %v1320, %v1312
    %1833 = vmatprep.subr.bf16.mxu0 %v1322
    %1834 = vmatpush1.bf16.msra.mxu0 %v1321
    %1835 = vmatprep.subr.bf16.mxu0 %v1330
    %1836 = vmatpush1.bf16.msra.mxu0 %v1329
    %1837 = vmatprep.subr.bf16.mxu0 %v1338
    %1838 = vmatpush1.bf16.msra.mxu0 %v1337
    %1839 = vmatprep.subr.bf16.mxu0 %v1346
    %1840 = vmatpush1.bf16.msra.mxu0 %v1345
    %1841 = vmatprep.subr.bf16.mxu0 %v1354
    %1842 = vmatpush1.bf16.msra.mxu0 %v1353
    %1843 = vmatprep.subr.bf16.mxu0 %v1362
    %1844 = vmatpush1.bf16.msra.mxu0 %v1361
    %1845 = vmatprep.subr.bf16.mxu0 %v1370
    %1846 = vmatpush1.bf16.msra.mxu0 %v1369
    %1847 = vmatprep.subr.bf16.mxu0 %v1378
    %1848 = vmatpush1.bf16.msra.mxu0 %v1377
    %1849 = vmatprep.subr.bf16.mxu0 %v1386
    %1850 = vmatpush1.bf16.msra.mxu0 %v1385
    %1851 = vmatprep.subr.bf16.mxu0 %v1394
    %1852 = vmatpush1.bf16.msra.mxu0 %v1393
    %1853 = vmatprep.subr.bf16.mxu0 %v1402
    %1854 = vmatpush1.bf16.msra.mxu0 %v1401
    %1855 = vmatprep.subr.bf16.mxu0 %v1410
    %1856 = vmatpush1.bf16.msra.mxu0 %v1409
    %1857 = vmatprep.subr.bf16.mxu0 %v1418
    %1858 = vmatpush1.bf16.msra.mxu0 %v1417
    %1859 = vmatprep.subr.bf16.mxu0 %v1426
    %1860 = vmatpush1.bf16.msra.mxu0 %v1425
    %1861 = vmatprep.subr.bf16.mxu0 %v1434
    %1862 = vmatpush1.bf16.msra.mxu0 %v1433
    %1863 = vmatprep.subr.bf16.mxu0 %v1442
    %1864 = vmatpush1.bf16.msra.mxu0 %v1441
    %1865 = vmatprep.mubr.bf16.mxu0 %v252
    %1866 = vmatmul.mubr.bf16.gmra.mrb[0].mxu0 %v251
    %v1867 = vpop.f32.mrb[0].mxu0
    %v1868 = vadd.f32 %v516, %v1867
    %v1869 = vpop.f32.mrb[0].mxu0
    %v1870 = vadd.f32 %v520, %v1869
    %v1871 = vpop.f32.mrb[0].mxu0
    %v1872 = vpop.f32.mrb[0].mxu0
    %1873 = vdwg.mxu0
    %1874 = vmatprep.subr.bf16.mxu0 %v1450
    %1875 = vmatpush1.bf16.msra.mxu0 %v1449
    %1876 = vmatprep.subr.bf16.mxu0 %v1458
    %1877 = vmatpush1.bf16.msra.mxu0 %v1457
    %1878 = vmatprep.subr.bf16.mxu0 %v1466
    %1879 = vmatpush1.bf16.msra.mxu0 %v1465
    %1880 = vmatprep.subr.bf16.mxu0 %v1474
    %1881 = vmatpush1.bf16.msra.mxu0 %v1473
    %1882 = vmatprep.subr.bf16.mxu0 %v1482
    %1883 = vmatpush1.bf16.msra.mxu0 %v1481
    %1884 = vmatprep.subr.bf16.mxu0 %v1490
    %1885 = vmatpush1.bf16.msra.mxu0 %v1489
    %1886 = vmatprep.subr.bf16.mxu0 %v1498
    %1887 = vmatpush1.bf16.msra.mxu0 %v1497
    %1888 = vmatprep.subr.bf16.mxu0 %v1506
    %1889 = vmatpush1.bf16.msra.mxu0 %v1505
    %1890 = vmatprep.subr.bf16.mxu0 %v1514
    %1891 = vmatpush1.bf16.msra.mxu0 %v1513
    %1892 = vmatprep.subr.bf16.mxu0 %v1522
    %1893 = vmatpush1.bf16.msra.mxu0 %v1521
    %1894 = vmatprep.subr.bf16.mxu0 %v1530
    %1895 = vmatpush1.bf16.msra.mxu0 %v1529
    %1896 = vmatprep.subr.bf16.mxu0 %v1538
    %1897 = vmatpush1.bf16.msra.mxu0 %v1537
    %1898 = vmatprep.subr.bf16.mxu0 %v1546
    %1899 = vmatpush1.bf16.msra.mxu0 %v1545
    %1900 = vmatprep.subr.bf16.mxu0 %v1554
    %1901 = vmatpush1.bf16.msra.mxu0 %v1553
    %1902 = vmatprep.subr.bf16.mxu0 %v1562
    %1903 = vmatpush1.bf16.msra.mxu0 %v1561
    %1904 = vmatprep.subr.bf16.mxu0 %v1570
    %1905 = vmatpush1.bf16.msra.mxu0 %v1569
    %1906 = vmatprep.mubr.bf16.mxu0 %v254
    %1907 = vmatmul.mubr.bf16.gmra.mrb[0].mxu0 %v253
    %v1908 = vpop.f32.mrb[0].mxu0
    %v1909 = vadd.f32 %v1868, %v1908
    %v1910 = vpop.f32.mrb[0].mxu0
    %v1911 = vadd.f32 %v1870, %v1910
    %v1912 = vpop.f32.mrb[0].mxu0
    %v1913 = vpop.f32.mrb[0].mxu0
    %1914 = vdwg.mxu0
    %1915 = vmatprep.subr.bf16.mxu0 %v1324
    %1916 = vmatpush1.bf16.msra.mxu0 %v1323
    %1917 = vmatprep.subr.bf16.mxu0 %v1332
    %1918 = vmatpush1.bf16.msra.mxu0 %v1331
    %1919 = vmatprep.subr.bf16.mxu0 %v1340
    %1920 = vmatpush1.bf16.msra.mxu0 %v1339
    %1921 = vmatprep.subr.bf16.mxu0 %v1348
    %1922 = vmatpush1.bf16.msra.mxu0 %v1347
    %1923 = vmatprep.subr.bf16.mxu0 %v1356
    %1924 = vmatpush1.bf16.msra.mxu0 %v1355
    %1925 = vmatprep.subr.bf16.mxu0 %v1364
    %1926 = vmatpush1.bf16.msra.mxu0 %v1363
    %1927 = vmatprep.subr.bf16.mxu0 %v1372
    %1928 = vmatpush1.bf16.msra.mxu0 %v1371
    %1929 = vmatprep.subr.bf16.mxu0 %v1380
    %1930 = vmatpush1.bf16.msra.mxu0 %v1379
    %1931 = vmatprep.subr.bf16.mxu0 %v1388
    %1932 = vmatpush1.bf16.msra.mxu0 %v1387
    %1933 = vmatprep.subr.bf16.mxu0 %v1396
    %1934 = vmatpush1.bf16.msra.mxu0 %v1395
    %1935 = vmatprep.subr.bf16.mxu0 %v1404
    %1936 = vmatpush1.bf16.msra.mxu0 %v1403
    %1937 = vmatprep.subr.bf16.mxu0 %v1412
    %1938 = vmatpush1.bf16.msra.mxu0 %v1411
    %1939 = vmatprep.subr.bf16.mxu0 %v1420
    %1940 = vmatpush1.bf16.msra.mxu0 %v1419
    %1941 = vmatprep.subr.bf16.mxu0 %v1428
    %1942 = vmatpush1.bf16.msra.mxu0 %v1427
    %1943 = vmatprep.subr.bf16.mxu0 %v1436
    %1944 = vmatpush1.bf16.msra.mxu0 %v1435
    %1945 = vmatprep.subr.bf16.mxu0 %v1444
    %1946 = vmatpush1.bf16.msra.mxu0 %v1443
    %1947 = vmatprep.mubr.bf16.mxu0 %v252
    %1948 = vmatmul.mubr.bf16.gmra.mrb[0].mxu0 %v251
    %v1949 = vpop.f32.mrb[0].mxu0
    %v1950 = vadd.f32 %v524, %v1949
    %v1951 = vpop.f32.mrb[0].mxu0
    %v1952 = vadd.f32 %v528, %v1951
    %v1953 = vpop.f32.mrb[0].mxu0
    %v1954 = vpop.f32.mrb[0].mxu0
    %1955 = vdwg.mxu0
    %1956 = vmatprep.subr.bf16.mxu0 %v1452
    %1957 = vmatpush1.bf16.msra.mxu0 %v1451
    %1958 = vmatprep.subr.bf16.mxu0 %v1460
    %1959 = vmatpush1.bf16.msra.mxu0 %v1459
    %1960 = vmatprep.subr.bf16.mxu0 %v1468
    %1961 = vmatpush1.bf16.msra.mxu0 %v1467
    %1962 = vmatprep.subr.bf16.mxu0 %v1476
    %1963 = vmatpush1.bf16.msra.mxu0 %v1475
    %1964 = vmatprep.subr.bf16.mxu0 %v1484
    %1965 = vmatpush1.bf16.msra.mxu0 %v1483
    %1966 = vmatprep.subr.bf16.mxu0 %v1492
    %1967 = vmatpush1.bf16.msra.mxu0 %v1491
    %1968 = vmatprep.subr.bf16.mxu0 %v1500
    %1969 = vmatpush1.bf16.msra.mxu0 %v1499
    %1970 = vmatprep.subr.bf16.mxu0 %v1508
    %1971 = vmatpush1.bf16.msra.mxu0 %v1507
    %1972 = vmatprep.subr.bf16.mxu0 %v1516
    %1973 = vmatpush1.bf16.msra.mxu0 %v1515
    %1974 = vmatprep.subr.bf16.mxu0 %v1524
    %1975 = vmatpush1.bf16.msra.mxu0 %v1523
    %1976 = vmatprep.subr.bf16.mxu0 %v1532
    %1977 = vmatpush1.bf16.msra.mxu0 %v1531
    %1978 = vmatprep.subr.bf16.mxu0 %v1540
    %1979 = vmatpush1.bf16.msra.mxu0 %v1539
    %1980 = vmatprep.subr.bf16.mxu0 %v1548
    %1981 = vmatpush1.bf16.msra.mxu0 %v1547
    %1982 = vmatprep.subr.bf16.mxu0 %v1556
    %1983 = vmatpush1.bf16.msra.mxu0 %v1555
    %1984 = vmatprep.subr.bf16.mxu0 %v1564
    %1985 = vmatpush1.bf16.msra.mxu0 %v1563
    %1986 = vmatprep.subr.bf16.mxu0 %v1572
    %1987 = vmatpush1.bf16.msra.mxu0 %v1571
    %1988 = vmatprep.mubr.bf16.mxu0 %v254
    %1989 = vmatmul.mubr.bf16.gmra.mrb[0].mxu0 %v253
    %v1990 = vpop.f32.mrb[0].mxu0
    %v1991 = vadd.f32 %v1950, %v1990
    %v1992 = vpop.f32.mrb[0].mxu0
    %v1993 = vadd.f32 %v1952, %v1992
    %v1994 = vpop.f32.mrb[0].mxu0
    %v1995 = vpop.f32.mrb[0].mxu0
    %1996 = vdwg.mxu0
    %1997 = vmatprep.subr.bf16.mxu0 %v1326
    %1998 = vmatpush1.bf16.msra.mxu0 %v1325
    %1999 = vmatprep.subr.bf16.mxu0 %v1334
    %2000 = vmatpush1.bf16.msra.mxu0 %v1333
    %2001 = vmatprep.subr.bf16.mxu0 %v1342
    %2002 = vmatpush1.bf16.msra.mxu0 %v1341
    %2003 = vmatprep.subr.bf16.mxu0 %v1350
    %2004 = vmatpush1.bf16.msra.mxu0 %v1349
    %2005 = vmatprep.subr.bf16.mxu0 %v1358
    %2006 = vmatpush1.bf16.msra.mxu0 %v1357
    %2007 = vmatprep.subr.bf16.mxu0 %v1366
    %2008 = vmatpush1.bf16.msra.mxu0 %v1365
    %2009 = vmatprep.subr.bf16.mxu0 %v1374
    %2010 = vmatpush1.bf16.msra.mxu0 %v1373
    %2011 = vmatprep.subr.bf16.mxu0 %v1382
    %2012 = vmatpush1.bf16.msra.mxu0 %v1381
    %2013 = vmatprep.subr.bf16.mxu0 %v1390
    %2014 = vmatpush1.bf16.msra.mxu0 %v1389
    %2015 = vmatprep.subr.bf16.mxu0 %v1398
    %2016 = vmatpush1.bf16.msra.mxu0 %v1397
    %2017 = vmatprep.subr.bf16.mxu0 %v1406
    %2018 = vmatpush1.bf16.msra.mxu0 %v1405
    %2019 = vmatprep.subr.bf16.mxu0 %v1414
    %2020 = vmatpush1.bf16.msra.mxu0 %v1413
    %2021 = vmatprep.subr.bf16.mxu0 %v1422
    %2022 = vmatpush1.bf16.msra.mxu0 %v1421
    %2023 = vmatprep.subr.bf16.mxu0 %v1430
    %2024 = vmatpush1.bf16.msra.mxu0 %v1429
    %2025 = vmatprep.subr.bf16.mxu0 %v1438
    %2026 = vmatpush1.bf16.msra.mxu0 %v1437
    %2027 = vmatprep.subr.bf16.mxu0 %v1446
    %2028 = vmatpush1.bf16.msra.mxu0 %v1445
    %2029 = vmatprep.mubr.bf16.mxu0 %v252
    %2030 = vmatmul.mubr.bf16.gmra.mrb[0].mxu0 %v251
    %v2031 = vpop.f32.mrb[0].mxu0
    %v2032 = vadd.f32 %v532, %v2031
    %v2033 = vpop.f32.mrb[0].mxu0
    %v2034 = vadd.f32 %v536, %v2033
    %v2035 = vpop.f32.mrb[0].mxu0
    %v2036 = vpop.f32.mrb[0].mxu0
    %2037 = vdwg.mxu0
    %2038 = vmatprep.subr.bf16.mxu0 %v1454
    %2039 = vmatpush1.bf16.msra.mxu0 %v1453
    %2040 = vmatprep.subr.bf16.mxu0 %v1462
    %2041 = vmatpush1.bf16.msra.mxu0 %v1461
    %2042 = vmatprep.subr.bf16.mxu0 %v1470
    %2043 = vmatpush1.bf16.msra.mxu0 %v1469
    %2044 = vmatprep.subr.bf16.mxu0 %v1478
    %2045 = vmatpush1.bf16.msra.mxu0 %v1477
    %2046 = vmatprep.subr.bf16.mxu0 %v1486
    %2047 = vmatpush1.bf16.msra.mxu0 %v1485
    %2048 = vmatprep.subr.bf16.mxu0 %v1494
    %2049 = vmatpush1.bf16.msra.mxu0 %v1493
    %2050 = vmatprep.subr.bf16.mxu0 %v1502
    %2051 = vmatpush1.bf16.msra.mxu0 %v1501
    %2052 = vmatprep.subr.bf16.mxu0 %v1510
    %2053 = vmatpush1.bf16.msra.mxu0 %v1509
    %2054 = vmatprep.subr.bf16.mxu0 %v1518
    %2055 = vmatpush1.bf16.msra.mxu0 %v1517
    %2056 = vmatprep.subr.bf16.mxu0 %v1526
    %2057 = vmatpush1.bf16.msra.mxu0 %v1525
    %2058 = vmatprep.subr.bf16.mxu0 %v1534
    %2059 = vmatpush1.bf16.msra.mxu0 %v1533
    %2060 = vmatprep.subr.bf16.mxu0 %v1542
    %2061 = vmatpush1.bf16.msra.mxu0 %v1541
    %2062 = vmatprep.subr.bf16.mxu0 %v1550
    %2063 = vmatpush1.bf16.msra.mxu0 %v1549
    %2064 = vmatprep.subr.bf16.mxu0 %v1558
    %2065 = vmatpush1.bf16.msra.mxu0 %v1557
    %2066 = vmatprep.subr.bf16.mxu0 %v1566
    %2067 = vmatpush1.bf16.msra.mxu0 %v1565
    %2068 = vmatprep.subr.bf16.mxu0 %v1574
    %2069 = vmatpush1.bf16.msra.mxu0 %v1573
    %2070 = vmatprep.mubr.bf16.mxu0 %v254
    %2071 = vmatmul.mubr.bf16.gmra.mrb[0].mxu0 %v253
    %v2072 = vpop.f32.mrb[0].mxu0
    %v2073 = vadd.f32 %v2032, %v2072
    %v2074 = vpop.f32.mrb[0].mxu0
    %v2075 = vadd.f32 %v2034, %v2074
    %v2076 = vpop.f32.mrb[0].mxu0
    %v2077 = vpop.f32.mrb[0].mxu0
    %2078 = vdwg.mxu0
    %2079 = vmatprep.subr.bf16.mxu0 %v1328
    %2080 = vmatpush1.bf16.msra.mxu0 %v1327
    %2081 = vmatprep.subr.bf16.mxu0 %v1336
    %2082 = vmatpush1.bf16.msra.mxu0 %v1335
    %2083 = vmatprep.subr.bf16.mxu0 %v1344
    %2084 = vmatpush1.bf16.msra.mxu0 %v1343
    %2085 = vmatprep.subr.bf16.mxu0 %v1352
    %2086 = vmatpush1.bf16.msra.mxu0 %v1351
    %2087 = vmatprep.subr.bf16.mxu0 %v1360
    %2088 = vmatpush1.bf16.msra.mxu0 %v1359
    %2089 = vmatprep.subr.bf16.mxu0 %v1368
    %2090 = vmatpush1.bf16.msra.mxu0 %v1367
    %2091 = vmatprep.subr.bf16.mxu0 %v1376
    %2092 = vmatpush1.bf16.msra.mxu0 %v1375
    %2093 = vmatprep.subr.bf16.mxu0 %v1384
    %2094 = vmatpush1.bf16.msra.mxu0 %v1383
    %2095 = vmatprep.subr.bf16.mxu0 %v1392
    %2096 = vmatpush1.bf16.msra.mxu0 %v1391
    %2097 = vmatprep.subr.bf16.mxu0 %v1400
    %2098 = vmatpush1.bf16.msra.mxu0 %v1399
    %2099 = vmatprep.subr.bf16.mxu0 %v1408
    %2100 = vmatpush1.bf16.msra.mxu0 %v1407
    %2101 = vmatprep.subr.bf16.mxu0 %v1416
    %2102 = vmatpush1.bf16.msra.mxu0 %v1415
    %2103 = vmatprep.subr.bf16.mxu0 %v1424
    %2104 = vmatpush1.bf16.msra.mxu0 %v1423
    %2105 = vmatprep.subr.bf16.mxu0 %v1432
    %2106 = vmatpush1.bf16.msra.mxu0 %v1431
    %2107 = vmatprep.subr.bf16.mxu0 %v1440
    %2108 = vmatpush1.bf16.msra.mxu0 %v1439
    %2109 = vmatprep.subr.bf16.mxu0 %v1448
    %2110 = vmatpush1.bf16.msra.mxu0 %v1447
    %2111 = vmatprep.mubr.bf16.mxu0 %v252
    %2112 = vmatmul.mubr.bf16.gmra.mrb[0].mxu0 %v251
    %v2113 = vpop.f32.mrb[0].mxu0
    %v2114 = vadd.f32 %v540, %v2113
    %v2115 = vpop.f32.mrb[0].mxu0
    %v2116 = vadd.f32 %v544, %v2115
    %v2117 = vpop.f32.mrb[0].mxu0
    %v2118 = vpop.f32.mrb[0].mxu0
    %2119 = vdwg.mxu0
    %2120 = vmatprep.subr.bf16.mxu0 %v1456
    %2121 = vmatpush1.bf16.msra.mxu0 %v1455
    %2122 = vmatprep.subr.bf16.mxu0 %v1464
    %2123 = vmatpush1.bf16.msra.mxu0 %v1463
    %2124 = vmatprep.subr.bf16.mxu0 %v1472
    %2125 = vmatpush1.bf16.msra.mxu0 %v1471
    %2126 = vmatprep.subr.bf16.mxu0 %v1480
    %2127 = vmatpush1.bf16.msra.mxu0 %v1479
    %2128 = vmatprep.subr.bf16.mxu0 %v1488
    %2129 = vmatpush1.bf16.msra.mxu0 %v1487
    %2130 = vmatprep.subr.bf16.mxu0 %v1496
    %2131 = vmatpush1.bf16.msra.mxu0 %v1495
    %2132 = vmatprep.subr.bf16.mxu0 %v1504
    %2133 = vmatpush1.bf16.msra.mxu0 %v1503
    %2134 = vmatprep.subr.bf16.mxu0 %v1512
    %2135 = vmatpush1.bf16.msra.mxu0 %v1511
    %2136 = vmatprep.subr.bf16.mxu0 %v1520
    %2137 = vmatpush1.bf16.msra.mxu0 %v1519
    %2138 = vmatprep.subr.bf16.mxu0 %v1528
    %2139 = vmatpush1.bf16.msra.mxu0 %v1527
    %2140 = vmatprep.subr.bf16.mxu0 %v1536
    %2141 = vmatpush1.bf16.msra.mxu0 %v1535
    %2142 = vmatprep.subr.bf16.mxu0 %v1544
    %2143 = vmatpush1.bf16.msra.mxu0 %v1543
    %2144 = vmatprep.subr.bf16.mxu0 %v1552
    %2145 = vmatpush1.bf16.msra.mxu0 %v1551
    %2146 = vmatprep.subr.bf16.mxu0 %v1560
    %2147 = vmatpush1.bf16.msra.mxu0 %v1559
    %2148 = vmatprep.subr.bf16.mxu0 %v1568
    %2149 = vmatpush1.bf16.msra.mxu0 %v1567
    %2150 = vmatprep.subr.bf16.mxu0 %v1576
    %2151 = vmatpush1.bf16.msra.mxu0 %v1575
    %2152 = vmatprep.mubr.bf16.mxu0 %v254
    %2153 = vmatmul.mubr.bf16.gmra.mrb[0].mxu0 %v253
    %v2154 = vpop.f32.mrb[0].mxu0
    %v2155 = vadd.f32 %v2114, %v2154
    %v2156 = vpop.f32.mrb[0].mxu0
    %v2157 = vadd.f32 %v2116, %v2156
    %v2158 = vpop.f32.mrb[0].mxu0
    %v2159 = vpop.f32.mrb[0].mxu0
    %2160 = vdwg.mxu0
    %v2161 = vmax.f32 %v1909, 0.0
    %v2162 = vmax.f32 %v1911, 0.0
    %v2163 = vmax.f32 %v1991, 0.0
    %v2164 = vmax.f32 %v1993, 0.0
    %v2165 = vmax.f32 %v2073, 0.0
    %v2166 = vmax.f32 %v2075, 0.0
    %v2167 = vmax.f32 %v2155, 0.0
    %v2168 = vmax.f32 %v2157, 0.0
    %v2169 = vpack.c.bf16 %v2161, %v2161
    %v2170 = vpack.c.bf16 %v2162, %v2162
    %v2171 = vpack.c.bf16 %v2163, %v2163
    %v2172 = vpack.c.bf16 %v2164, %v2164
    %v2173 = vpack.c.bf16 %v2165, %v2165
    %v2174 = vpack.c.bf16 %v2166, %v2166
    %v2175 = vpack.c.bf16 %v2167, %v2167
    %v2176 = vpack.c.bf16 %v2168, %v2168
    %v2177 = vld [vmem:[#allocation9] sm:$0xff]
    %v2178 = vld [vmem:[#allocation9 + $0x8] sm:$0xff]
    %v2179 = vld [vmem:[#allocation9 + $0x10] sm:$0xff]
    %v2180 = vld [vmem:[#allocation9 + $0x18] sm:$0xff]
    %v2181 = vld [vmem:[#allocation9 + $0x20] sm:$0xff]
    %v2182 = vld [vmem:[#allocation9 + $0x28] sm:$0xff]
    %v2183 = vld [vmem:[#allocation9 + $0x30] sm:$0xff]
    %v2184 = vld [vmem:[#allocation9 + $0x38] sm:$0xff]
    %v2185 = vld [vmem:[#allocation9 + $0x40] sm:$0xff]
    %v2186 = vld [vmem:[#allocation9 + $0x48] sm:$0xff]
    %v2187 = vld [vmem:[#allocation9 + $0x50] sm:$0xff]
    %v2188 = vld [vmem:[#allocation9 + $0x58] sm:$0xff]
    %v2189 = vld [vmem:[#allocation9 + $0x60] sm:$0xff]
    %v2190 = vld [vmem:[#allocation9 + $0x68] sm:$0xff]
    %v2191 = vld [vmem:[#allocation9 + $0x70] sm:$0xff]
    %v2192 = vld [vmem:[#allocation9 + $0x78] sm:$0xff]
    %v2193 = vld [vmem:[#allocation9 + $0x80] sm:$0xff]
    %v2194 = vld [vmem:[#allocation9 + $0x88] sm:$0xff]
    %v2195 = vld [vmem:[#allocation9 + $0x90] sm:$0xff]
    %v2196 = vld [vmem:[#allocation9 + $0x98] sm:$0xff]
    %v2197 = vld [vmem:[#allocation9 + $0xa0] sm:$0xff]
    %v2198 = vld [vmem:[#allocation9 + $0xa8] sm:$0xff]
    %v2199 = vld [vmem:[#allocation9 + $0xb0] sm:$0xff]
    %v2200 = vld [vmem:[#allocation9 + $0xb8] sm:$0xff]
    %v2201 = vld [vmem:[#allocation9 + $0xc0] sm:$0xff]
    %v2202 = vld [vmem:[#allocation9 + $0xc8] sm:$0xff]
    %v2203 = vld [vmem:[#allocation9 + $0xd0] sm:$0xff]
    %v2204 = vld [vmem:[#allocation9 + $0xd8] sm:$0xff]
    %v2205 = vld [vmem:[#allocation9 + $0xe0] sm:$0xff]
    %v2206 = vld [vmem:[#allocation9 + $0xe8] sm:$0xff]
    %v2207 = vld [vmem:[#allocation9 + $0xf0] sm:$0xff]
    %v2208 = vld [vmem:[#allocation9 + $0xf8] sm:$0xff]
    %v2209 = vld [vmem:[#allocation9 + $0x100] sm:$0xff]
    %v2210 = vld [vmem:[#allocation9 + $0x108] sm:$0xff]
    %v2211 = vld [vmem:[#allocation9 + $0x110] sm:$0xff]
    %v2212 = vld [vmem:[#allocation9 + $0x118] sm:$0xff]
    %v2213 = vld [vmem:[#allocation9 + $0x120] sm:$0xff]
    %v2214 = vld [vmem:[#allocation9 + $0x128] sm:$0xff]
    %v2215 = vld [vmem:[#allocation9 + $0x130] sm:$0xff]
    %v2216 = vld [vmem:[#allocation9 + $0x138] sm:$0xff]
    %v2217 = vld [vmem:[#allocation9 + $0x140] sm:$0xff]
    %v2218 = vld [vmem:[#allocation9 + $0x148] sm:$0xff]
    %v2219 = vld [vmem:[#allocation9 + $0x150] sm:$0xff]
    %v2220 = vld [vmem:[#allocation9 + $0x158] sm:$0xff]
    %v2221 = vld [vmem:[#allocation9 + $0x160] sm:$0xff]
    %v2222 = vld [vmem:[#allocation9 + $0x168] sm:$0xff]
    %v2223 = vld [vmem:[#allocation9 + $0x170] sm:$0xff]
    %v2224 = vld [vmem:[#allocation9 + $0x178] sm:$0xff]
    %v2225 = vld [vmem:[#allocation9 + $0x180] sm:$0xff]
    %v2226 = vld [vmem:[#allocation9 + $0x188] sm:$0xff]
    %v2227 = vld [vmem:[#allocation9 + $0x190] sm:$0xff]
    %v2228 = vld [vmem:[#allocation9 + $0x198] sm:$0xff]
    %v2229 = vld [vmem:[#allocation9 + $0x1a0] sm:$0xff]
    %v2230 = vld [vmem:[#allocation9 + $0x1a8] sm:$0xff]
    %v2231 = vld [vmem:[#allocation9 + $0x1b0] sm:$0xff]
    %v2232 = vld [vmem:[#allocation9 + $0x1b8] sm:$0xff]
    %v2233 = vld [vmem:[#allocation9 + $0x1c0] sm:$0xff]
    %v2234 = vld [vmem:[#allocation9 + $0x1c8] sm:$0xff]
    %v2235 = vld [vmem:[#allocation9 + $0x1d0] sm:$0xff]
    %v2236 = vld [vmem:[#allocation9 + $0x1d8] sm:$0xff]
    %v2237 = vld [vmem:[#allocation9 + $0x1e0] sm:$0xff]
    %v2238 = vld [vmem:[#allocation9 + $0x1e8] sm:$0xff]
    %v2239 = vld [vmem:[#allocation9 + $0x1f0] sm:$0xff]
    %v2240 = vld [vmem:[#allocation9 + $0x1f8] sm:$0xff]
    %v2241 = vld [vmem:[#allocation9 + $0x200] sm:$0xff]
    %v2242 = vld [vmem:[#allocation9 + $0x208] sm:$0xff]
    %v2243 = vld [vmem:[#allocation9 + $0x210] sm:$0xff]
    %v2244 = vld [vmem:[#allocation9 + $0x218] sm:$0xff]
    %v2245 = vld [vmem:[#allocation9 + $0x220] sm:$0xff]
    %v2246 = vld [vmem:[#allocation9 + $0x228] sm:$0xff]
    %v2247 = vld [vmem:[#allocation9 + $0x230] sm:$0xff]
    %v2248 = vld [vmem:[#allocation9 + $0x238] sm:$0xff]
    %v2249 = vld [vmem:[#allocation9 + $0x240] sm:$0xff]
    %v2250 = vld [vmem:[#allocation9 + $0x248] sm:$0xff]
    %v2251 = vld [vmem:[#allocation9 + $0x250] sm:$0xff]
    %v2252 = vld [vmem:[#allocation9 + $0x258] sm:$0xff]
    %v2253 = vld [vmem:[#allocation9 + $0x260] sm:$0xff]
    %v2254 = vld [vmem:[#allocation9 + $0x268] sm:$0xff]
    %v2255 = vld [vmem:[#allocation9 + $0x270] sm:$0xff]
    %v2256 = vld [vmem:[#allocation9 + $0x278] sm:$0xff]
    %v2257 = vld [vmem:[#allocation9 + $0x280] sm:$0xff]
    %v2258 = vld [vmem:[#allocation9 + $0x288] sm:$0xff]
    %v2259 = vld [vmem:[#allocation9 + $0x290] sm:$0xff]
    %v2260 = vld [vmem:[#allocation9 + $0x298] sm:$0xff]
    %v2261 = vld [vmem:[#allocation9 + $0x2a0] sm:$0xff]
    %v2262 = vld [vmem:[#allocation9 + $0x2a8] sm:$0xff]
    %v2263 = vld [vmem:[#allocation9 + $0x2b0] sm:$0xff]
    %v2264 = vld [vmem:[#allocation9 + $0x2b8] sm:$0xff]
    %v2265 = vld [vmem:[#allocation9 + $0x2c0] sm:$0xff]
    %v2266 = vld [vmem:[#allocation9 + $0x2c8] sm:$0xff]
    %v2267 = vld [vmem:[#allocation9 + $0x2d0] sm:$0xff]
    %v2268 = vld [vmem:[#allocation9 + $0x2d8] sm:$0xff]
    %v2269 = vld [vmem:[#allocation9 + $0x2e0] sm:$0xff]
    %v2270 = vld [vmem:[#allocation9 + $0x2e8] sm:$0xff]
    %v2271 = vld [vmem:[#allocation9 + $0x2f0] sm:$0xff]
    %v2272 = vld [vmem:[#allocation9 + $0x2f8] sm:$0xff]
    %v2273 = vld [vmem:[#allocation9 + $0x300] sm:$0xff]
    %v2274 = vld [vmem:[#allocation9 + $0x308] sm:$0xff]
    %v2275 = vld [vmem:[#allocation9 + $0x310] sm:$0xff]
    %v2276 = vld [vmem:[#allocation9 + $0x318] sm:$0xff]
    %v2277 = vld [vmem:[#allocation9 + $0x320] sm:$0xff]
    %v2278 = vld [vmem:[#allocation9 + $0x328] sm:$0xff]
    %v2279 = vld [vmem:[#allocation9 + $0x330] sm:$0xff]
    %v2280 = vld [vmem:[#allocation9 + $0x338] sm:$0xff]
    %v2281 = vld [vmem:[#allocation9 + $0x340] sm:$0xff]
    %v2282 = vld [vmem:[#allocation9 + $0x348] sm:$0xff]
    %v2283 = vld [vmem:[#allocation9 + $0x350] sm:$0xff]
    %v2284 = vld [vmem:[#allocation9 + $0x358] sm:$0xff]
    %v2285 = vld [vmem:[#allocation9 + $0x360] sm:$0xff]
    %v2286 = vld [vmem:[#allocation9 + $0x368] sm:$0xff]
    %v2287 = vld [vmem:[#allocation9 + $0x370] sm:$0xff]
    %v2288 = vld [vmem:[#allocation9 + $0x378] sm:$0xff]
    %v2289 = vld [vmem:[#allocation9 + $0x380] sm:$0xff]
    %v2290 = vld [vmem:[#allocation9 + $0x388] sm:$0xff]
    %v2291 = vld [vmem:[#allocation9 + $0x390] sm:$0xff]
    %v2292 = vld [vmem:[#allocation9 + $0x398] sm:$0xff]
    %v2293 = vld [vmem:[#allocation9 + $0x3a0] sm:$0xff]
    %v2294 = vld [vmem:[#allocation9 + $0x3a8] sm:$0xff]
    %v2295 = vld [vmem:[#allocation9 + $0x3b0] sm:$0xff]
    %v2296 = vld [vmem:[#allocation9 + $0x3b8] sm:$0xff]
    %v2297 = vld [vmem:[#allocation9 + $0x3c0] sm:$0xff]
    %v2298 = vld [vmem:[#allocation9 + $0x3c8] sm:$0xff]
    %v2299 = vld [vmem:[#allocation9 + $0x3d0] sm:$0xff]
    %v2300 = vld [vmem:[#allocation9 + $0x3d8] sm:$0xff]
    %v2301 = vld [vmem:[#allocation9 + $0x3e0] sm:$0xff]
    %v2302 = vld [vmem:[#allocation9 + $0x3e8] sm:$0xff]
    %v2303 = vld [vmem:[#allocation9 + $0x3f0] sm:$0xff]
    %v2304 = vld [vmem:[#allocation9 + $0x3f8] sm:$0xff]
    %v2305 = vld [vmem:[%s6] sm:$0x3]
    %v2307 = vlaneseq
    %v2308 = vshrl.u32 %v2307, 7
    %v2309 = vsub.s32 0, %v2308
    %v2310 = vrot.slane %v2305, %v2309
    %v2311 = vlaneseq
    %v2312 = vshrl.u32 %v2311, 7
    %v2313 = vsub.s32 1, %v2312
    %v2314 = vrot.slane %v2305, %v2313
    %v2445 = vunpack.c.l.b16 %v2177
    %v2446 = vunpack.c.h.b16 %v2177
    %v2447 = vunpack.c.l.b16 %v2178
    %v2448 = vunpack.c.h.b16 %v2178
    %v2449 = vunpack.c.l.b16 %v2179
    %v2450 = vunpack.c.h.b16 %v2179
    %v2451 = vunpack.c.l.b16 %v2180
    %v2452 = vunpack.c.h.b16 %v2180
    %v2453 = vunpack.c.l.b16 %v2181
    %v2454 = vunpack.c.h.b16 %v2181
    %v2455 = vunpack.c.l.b16 %v2182
    %v2456 = vunpack.c.h.b16 %v2182
    %v2457 = vunpack.c.l.b16 %v2183
    %v2458 = vunpack.c.h.b16 %v2183
    %v2459 = vunpack.c.l.b16 %v2184
    %v2460 = vunpack.c.h.b16 %v2184
    %v2461 = vunpack.c.l.b16 %v2185
    %v2462 = vunpack.c.h.b16 %v2185
    %v2463 = vunpack.c.l.b16 %v2186
    %v2464 = vunpack.c.h.b16 %v2186
    %v2465 = vunpack.c.l.b16 %v2187
    %v2466 = vunpack.c.h.b16 %v2187
    %v2467 = vunpack.c.l.b16 %v2188
    %v2468 = vunpack.c.h.b16 %v2188
    %v2469 = vunpack.c.l.b16 %v2189
    %v2470 = vunpack.c.h.b16 %v2189
    %v2471 = vunpack.c.l.b16 %v2190
    %v2472 = vunpack.c.h.b16 %v2190
    %v2473 = vunpack.c.l.b16 %v2191
    %v2474 = vunpack.c.h.b16 %v2191
    %v2475 = vunpack.c.l.b16 %v2192
    %v2476 = vunpack.c.h.b16 %v2192
    %v2477 = vunpack.c.l.b16 %v2193
    %v2478 = vunpack.c.h.b16 %v2193
    %v2479 = vunpack.c.l.b16 %v2194
    %v2480 = vunpack.c.h.b16 %v2194
    %v2481 = vunpack.c.l.b16 %v2195
    %v2482 = vunpack.c.h.b16 %v2195
    %v2483 = vunpack.c.l.b16 %v2196
    %v2484 = vunpack.c.h.b16 %v2196
    %v2485 = vunpack.c.l.b16 %v2197
    %v2486 = vunpack.c.h.b16 %v2197
    %v2487 = vunpack.c.l.b16 %v2198
    %v2488 = vunpack.c.h.b16 %v2198
    %v2489 = vunpack.c.l.b16 %v2199
    %v2490 = vunpack.c.h.b16 %v2199
    %v2491 = vunpack.c.l.b16 %v2200
    %v2492 = vunpack.c.h.b16 %v2200
    %v2493 = vunpack.c.l.b16 %v2201
    %v2494 = vunpack.c.h.b16 %v2201
    %v2495 = vunpack.c.l.b16 %v2202
    %v2496 = vunpack.c.h.b16 %v2202
    %v2497 = vunpack.c.l.b16 %v2203
    %v2498 = vunpack.c.h.b16 %v2203
    %v2499 = vunpack.c.l.b16 %v2204
    %v2500 = vunpack.c.h.b16 %v2204
    %v2501 = vunpack.c.l.b16 %v2205
    %v2502 = vunpack.c.h.b16 %v2205
    %v2503 = vunpack.c.l.b16 %v2206
    %v2504 = vunpack.c.h.b16 %v2206
    %v2505 = vunpack.c.l.b16 %v2207
    %v2506 = vunpack.c.h.b16 %v2207
    %v2507 = vunpack.c.l.b16 %v2208
    %v2508 = vunpack.c.h.b16 %v2208
    %v2509 = vunpack.c.l.b16 %v2209
    %v2510 = vunpack.c.h.b16 %v2209
    %v2511 = vunpack.c.l.b16 %v2210
    %v2512 = vunpack.c.h.b16 %v2210
    %v2513 = vunpack.c.l.b16 %v2211
    %v2514 = vunpack.c.h.b16 %v2211
    %v2515 = vunpack.c.l.b16 %v2212
    %v2516 = vunpack.c.h.b16 %v2212
    %v2517 = vunpack.c.l.b16 %v2213
    %v2518 = vunpack.c.h.b16 %v2213
    %v2519 = vunpack.c.l.b16 %v2214
    %v2520 = vunpack.c.h.b16 %v2214
    %v2521 = vunpack.c.l.b16 %v2215
    %v2522 = vunpack.c.h.b16 %v2215
    %v2523 = vunpack.c.l.b16 %v2216
    %v2524 = vunpack.c.h.b16 %v2216
    %v2525 = vunpack.c.l.b16 %v2217
    %v2526 = vunpack.c.h.b16 %v2217
    %v2527 = vunpack.c.l.b16 %v2218
    %v2528 = vunpack.c.h.b16 %v2218
    %v2529 = vunpack.c.l.b16 %v2219
    %v2530 = vunpack.c.h.b16 %v2219
    %v2531 = vunpack.c.l.b16 %v2220
    %v2532 = vunpack.c.h.b16 %v2220
    %v2533 = vunpack.c.l.b16 %v2221
    %v2534 = vunpack.c.h.b16 %v2221
    %v2535 = vunpack.c.l.b16 %v2222
    %v2536 = vunpack.c.h.b16 %v2222
    %v2537 = vunpack.c.l.b16 %v2223
    %v2538 = vunpack.c.h.b16 %v2223
    %v2539 = vunpack.c.l.b16 %v2224
    %v2540 = vunpack.c.h.b16 %v2224
    %v2541 = vunpack.c.l.b16 %v2225
    %v2542 = vunpack.c.h.b16 %v2225
    %v2543 = vunpack.c.l.b16 %v2226
    %v2544 = vunpack.c.h.b16 %v2226
    %v2545 = vunpack.c.l.b16 %v2227
    %v2546 = vunpack.c.h.b16 %v2227
    %v2547 = vunpack.c.l.b16 %v2228
    %v2548 = vunpack.c.h.b16 %v2228
    %v2549 = vunpack.c.l.b16 %v2229
    %v2550 = vunpack.c.h.b16 %v2229
    %v2551 = vunpack.c.l.b16 %v2230
    %v2552 = vunpack.c.h.b16 %v2230
    %v2553 = vunpack.c.l.b16 %v2231
    %v2554 = vunpack.c.h.b16 %v2231
    %v2555 = vunpack.c.l.b16 %v2232
    %v2556 = vunpack.c.h.b16 %v2232
    %v2557 = vunpack.c.l.b16 %v2233
    %v2558 = vunpack.c.h.b16 %v2233
    %v2559 = vunpack.c.l.b16 %v2234
    %v2560 = vunpack.c.h.b16 %v2234
    %v2561 = vunpack.c.l.b16 %v2235
    %v2562 = vunpack.c.h.b16 %v2235
    %v2563 = vunpack.c.l.b16 %v2236
    %v2564 = vunpack.c.h.b16 %v2236
    %v2565 = vunpack.c.l.b16 %v2237
    %v2566 = vunpack.c.h.b16 %v2237
    %v2567 = vunpack.c.l.b16 %v2238
    %v2568 = vunpack.c.h.b16 %v2238
    %v2569 = vunpack.c.l.b16 %v2239
    %v2570 = vunpack.c.h.b16 %v2239
    %v2571 = vunpack.c.l.b16 %v2240
    %v2572 = vunpack.c.h.b16 %v2240
    %v2573 = vunpack.c.l.b16 %v2241
    %v2574 = vunpack.c.h.b16 %v2241
    %v2575 = vunpack.c.l.b16 %v2242
    %v2576 = vunpack.c.h.b16 %v2242
    %v2577 = vunpack.c.l.b16 %v2243
    %v2578 = vunpack.c.h.b16 %v2243
    %v2579 = vunpack.c.l.b16 %v2244
    %v2580 = vunpack.c.h.b16 %v2244
    %v2581 = vunpack.c.l.b16 %v2245
    %v2582 = vunpack.c.h.b16 %v2245
    %v2583 = vunpack.c.l.b16 %v2246
    %v2584 = vunpack.c.h.b16 %v2246
    %v2585 = vunpack.c.l.b16 %v2247
    %v2586 = vunpack.c.h.b16 %v2247
    %v2587 = vunpack.c.l.b16 %v2248
    %v2588 = vunpack.c.h.b16 %v2248
    %v2589 = vunpack.c.l.b16 %v2249
    %v2590 = vunpack.c.h.b16 %v2249
    %v2591 = vunpack.c.l.b16 %v2250
    %v2592 = vunpack.c.h.b16 %v2250
    %v2593 = vunpack.c.l.b16 %v2251
    %v2594 = vunpack.c.h.b16 %v2251
    %v2595 = vunpack.c.l.b16 %v2252
    %v2596 = vunpack.c.h.b16 %v2252
    %v2597 = vunpack.c.l.b16 %v2253
    %v2598 = vunpack.c.h.b16 %v2253
    %v2599 = vunpack.c.l.b16 %v2254
    %v2600 = vunpack.c.h.b16 %v2254
    %v2601 = vunpack.c.l.b16 %v2255
    %v2602 = vunpack.c.h.b16 %v2255
    %v2603 = vunpack.c.l.b16 %v2256
    %v2604 = vunpack.c.h.b16 %v2256
    %v2605 = vunpack.c.l.b16 %v2257
    %v2606 = vunpack.c.h.b16 %v2257
    %v2607 = vunpack.c.l.b16 %v2258
    %v2608 = vunpack.c.h.b16 %v2258
    %v2609 = vunpack.c.l.b16 %v2259
    %v2610 = vunpack.c.h.b16 %v2259
    %v2611 = vunpack.c.l.b16 %v2260
    %v2612 = vunpack.c.h.b16 %v2260
    %v2613 = vunpack.c.l.b16 %v2261
    %v2614 = vunpack.c.h.b16 %v2261
    %v2615 = vunpack.c.l.b16 %v2262
    %v2616 = vunpack.c.h.b16 %v2262
    %v2617 = vunpack.c.l.b16 %v2263
    %v2618 = vunpack.c.h.b16 %v2263
    %v2619 = vunpack.c.l.b16 %v2264
    %v2620 = vunpack.c.h.b16 %v2264
    %v2621 = vunpack.c.l.b16 %v2265
    %v2622 = vunpack.c.h.b16 %v2265
    %v2623 = vunpack.c.l.b16 %v2266
    %v2624 = vunpack.c.h.b16 %v2266
    %v2625 = vunpack.c.l.b16 %v2267
    %v2626 = vunpack.c.h.b16 %v2267
    %v2627 = vunpack.c.l.b16 %v2268
    %v2628 = vunpack.c.h.b16 %v2268
    %v2629 = vunpack.c.l.b16 %v2269
    %v2630 = vunpack.c.h.b16 %v2269
    %v2631 = vunpack.c.l.b16 %v2270
    %v2632 = vunpack.c.h.b16 %v2270
    %v2633 = vunpack.c.l.b16 %v2271
    %v2634 = vunpack.c.h.b16 %v2271
    %v2635 = vunpack.c.l.b16 %v2272
    %v2636 = vunpack.c.h.b16 %v2272
    %v2637 = vunpack.c.l.b16 %v2273
    %v2638 = vunpack.c.h.b16 %v2273
    %v2639 = vunpack.c.l.b16 %v2274
    %v2640 = vunpack.c.h.b16 %v2274
    %v2641 = vunpack.c.l.b16 %v2275
    %v2642 = vunpack.c.h.b16 %v2275
    %v2643 = vunpack.c.l.b16 %v2276
    %v2644 = vunpack.c.h.b16 %v2276
    %v2645 = vunpack.c.l.b16 %v2277
    %v2646 = vunpack.c.h.b16 %v2277
    %v2647 = vunpack.c.l.b16 %v2278
    %v2648 = vunpack.c.h.b16 %v2278
    %v2649 = vunpack.c.l.b16 %v2279
    %v2650 = vunpack.c.h.b16 %v2279
    %v2651 = vunpack.c.l.b16 %v2280
    %v2652 = vunpack.c.h.b16 %v2280
    %v2653 = vunpack.c.l.b16 %v2281
    %v2654 = vunpack.c.h.b16 %v2281
    %v2655 = vunpack.c.l.b16 %v2282
    %v2656 = vunpack.c.h.b16 %v2282
    %v2657 = vunpack.c.l.b16 %v2283
    %v2658 = vunpack.c.h.b16 %v2283
    %v2659 = vunpack.c.l.b16 %v2284
    %v2660 = vunpack.c.h.b16 %v2284
    %v2661 = vunpack.c.l.b16 %v2285
    %v2662 = vunpack.c.h.b16 %v2285
    %v2663 = vunpack.c.l.b16 %v2286
    %v2664 = vunpack.c.h.b16 %v2286
    %v2665 = vunpack.c.l.b16 %v2287
    %v2666 = vunpack.c.h.b16 %v2287
    %v2667 = vunpack.c.l.b16 %v2288
    %v2668 = vunpack.c.h.b16 %v2288
    %v2669 = vunpack.c.l.b16 %v2289
    %v2670 = vunpack.c.h.b16 %v2289
    %v2671 = vunpack.c.l.b16 %v2290
    %v2672 = vunpack.c.h.b16 %v2290
    %v2673 = vunpack.c.l.b16 %v2291
    %v2674 = vunpack.c.h.b16 %v2291
    %v2675 = vunpack.c.l.b16 %v2292
    %v2676 = vunpack.c.h.b16 %v2292
    %v2677 = vunpack.c.l.b16 %v2293
    %v2678 = vunpack.c.h.b16 %v2293
    %v2679 = vunpack.c.l.b16 %v2294
    %v2680 = vunpack.c.h.b16 %v2294
    %v2681 = vunpack.c.l.b16 %v2295
    %v2682 = vunpack.c.h.b16 %v2295
    %v2683 = vunpack.c.l.b16 %v2296
    %v2684 = vunpack.c.h.b16 %v2296
    %v2685 = vunpack.c.l.b16 %v2297
    %v2686 = vunpack.c.h.b16 %v2297
    %v2687 = vunpack.c.l.b16 %v2298
    %v2688 = vunpack.c.h.b16 %v2298
    %v2689 = vunpack.c.l.b16 %v2299
    %v2690 = vunpack.c.h.b16 %v2299
    %v2691 = vunpack.c.l.b16 %v2300
    %v2692 = vunpack.c.h.b16 %v2300
    %v2693 = vunpack.c.l.b16 %v2301
    %v2694 = vunpack.c.h.b16 %v2301
    %v2695 = vunpack.c.l.b16 %v2302
    %v2696 = vunpack.c.h.b16 %v2302
    %v2697 = vunpack.c.l.b16 %v2303
    %v2698 = vunpack.c.h.b16 %v2303
    %v2699 = vunpack.c.l.b16 %v2304
    %v2700 = vunpack.c.h.b16 %v2304
    %v2701 = vpack.c.b16 %v2447, %v2445
    %v2702 = vpack.c.b16 %v2448, %v2446
    %v2703 = vpack.c.b16 %v2451, %v2449
    %v2704 = vpack.c.b16 %v2452, %v2450
    %v2705 = vpack.c.b16 %v2455, %v2453
    %v2706 = vpack.c.b16 %v2456, %v2454
    %v2707 = vpack.c.b16 %v2459, %v2457
    %v2708 = vpack.c.b16 %v2460, %v2458
    %v2709 = vpack.c.b16 %v2463, %v2461
    %v2710 = vpack.c.b16 %v2464, %v2462
    %v2711 = vpack.c.b16 %v2467, %v2465
    %v2712 = vpack.c.b16 %v2468, %v2466
    %v2713 = vpack.c.b16 %v2471, %v2469
    %v2714 = vpack.c.b16 %v2472, %v2470
    %v2715 = vpack.c.b16 %v2475, %v2473
    %v2716 = vpack.c.b16 %v2476, %v2474
    %v2717 = vpack.c.b16 %v2479, %v2477
    %v2718 = vpack.c.b16 %v2480, %v2478
    %v2719 = vpack.c.b16 %v2483, %v2481
    %v2720 = vpack.c.b16 %v2484, %v2482
    %v2721 = vpack.c.b16 %v2487, %v2485
    %v2722 = vpack.c.b16 %v2488, %v2486
    %v2723 = vpack.c.b16 %v2491, %v2489
    %v2724 = vpack.c.b16 %v2492, %v2490
    %v2725 = vpack.c.b16 %v2495, %v2493
    %v2726 = vpack.c.b16 %v2496, %v2494
    %v2727 = vpack.c.b16 %v2499, %v2497
    %v2728 = vpack.c.b16 %v2500, %v2498
    %v2729 = vpack.c.b16 %v2503, %v2501
    %v2730 = vpack.c.b16 %v2504, %v2502
    %v2731 = vpack.c.b16 %v2507, %v2505
    %v2732 = vpack.c.b16 %v2508, %v2506
    %v2733 = vpack.c.b16 %v2511, %v2509
    %v2734 = vpack.c.b16 %v2512, %v2510
    %v2735 = vpack.c.b16 %v2515, %v2513
    %v2736 = vpack.c.b16 %v2516, %v2514
    %v2737 = vpack.c.b16 %v2519, %v2517
    %v2738 = vpack.c.b16 %v2520, %v2518
    %v2739 = vpack.c.b16 %v2523, %v2521
    %v2740 = vpack.c.b16 %v2524, %v2522
    %v2741 = vpack.c.b16 %v2527, %v2525
    %v2742 = vpack.c.b16 %v2528, %v2526
    %v2743 = vpack.c.b16 %v2531, %v2529
    %v2744 = vpack.c.b16 %v2532, %v2530
    %v2745 = vpack.c.b16 %v2535, %v2533
    %v2746 = vpack.c.b16 %v2536, %v2534
    %v2747 = vpack.c.b16 %v2539, %v2537
    %v2748 = vpack.c.b16 %v2540, %v2538
    %v2749 = vpack.c.b16 %v2543, %v2541
    %v2750 = vpack.c.b16 %v2544, %v2542
    %v2751 = vpack.c.b16 %v2547, %v2545
    %v2752 = vpack.c.b16 %v2548, %v2546
    %v2753 = vpack.c.b16 %v2551, %v2549
    %v2754 = vpack.c.b16 %v2552, %v2550
    %v2755 = vpack.c.b16 %v2555, %v2553
    %v2756 = vpack.c.b16 %v2556, %v2554
    %v2757 = vpack.c.b16 %v2559, %v2557
    %v2758 = vpack.c.b16 %v2560, %v2558
    %v2759 = vpack.c.b16 %v2563, %v2561
    %v2760 = vpack.c.b16 %v2564, %v2562
    %v2761 = vpack.c.b16 %v2567, %v2565
    %v2762 = vpack.c.b16 %v2568, %v2566
    %v2763 = vpack.c.b16 %v2571, %v2569
    %v2764 = vpack.c.b16 %v2572, %v2570
    %v2765 = vpack.c.b16 %v2575, %v2573
    %v2766 = vpack.c.b16 %v2576, %v2574
    %v2767 = vpack.c.b16 %v2579, %v2577
    %v2768 = vpack.c.b16 %v2580, %v2578
    %v2769 = vpack.c.b16 %v2583, %v2581
    %v2770 = vpack.c.b16 %v2584, %v2582
    %v2771 = vpack.c.b16 %v2587, %v2585
    %v2772 = vpack.c.b16 %v2588, %v2586
    %v2773 = vpack.c.b16 %v2591, %v2589
    %v2774 = vpack.c.b16 %v2592, %v2590
    %v2775 = vpack.c.b16 %v2595, %v2593
    %v2776 = vpack.c.b16 %v2596, %v2594
    %v2777 = vpack.c.b16 %v2599, %v2597
    %v2778 = vpack.c.b16 %v2600, %v2598
    %v2779 = vpack.c.b16 %v2603, %v2601
    %v2780 = vpack.c.b16 %v2604, %v2602
    %v2781 = vpack.c.b16 %v2607, %v2605
    %v2782 = vpack.c.b16 %v2608, %v2606
    %v2783 = vpack.c.b16 %v2611, %v2609
    %v2784 = vpack.c.b16 %v2612, %v2610
    %v2785 = vpack.c.b16 %v2615, %v2613
    %v2786 = vpack.c.b16 %v2616, %v2614
    %v2787 = vpack.c.b16 %v2619, %v2617
    %v2788 = vpack.c.b16 %v2620, %v2618
    %v2789 = vpack.c.b16 %v2623, %v2621
    %v2790 = vpack.c.b16 %v2624, %v2622
    %v2791 = vpack.c.b16 %v2627, %v2625
    %v2792 = vpack.c.b16 %v2628, %v2626
    %v2793 = vpack.c.b16 %v2631, %v2629
    %v2794 = vpack.c.b16 %v2632, %v2630
    %v2795 = vpack.c.b16 %v2635, %v2633
    %v2796 = vpack.c.b16 %v2636, %v2634
    %v2797 = vpack.c.b16 %v2639, %v2637
    %v2798 = vpack.c.b16 %v2640, %v2638
    %v2799 = vpack.c.b16 %v2643, %v2641
    %v2800 = vpack.c.b16 %v2644, %v2642
    %v2801 = vpack.c.b16 %v2647, %v2645
    %v2802 = vpack.c.b16 %v2648, %v2646
    %v2803 = vpack.c.b16 %v2651, %v2649
    %v2804 = vpack.c.b16 %v2652, %v2650
    %v2805 = vpack.c.b16 %v2655, %v2653
    %v2806 = vpack.c.b16 %v2656, %v2654
    %v2807 = vpack.c.b16 %v2659, %v2657
    %v2808 = vpack.c.b16 %v2660, %v2658
    %v2809 = vpack.c.b16 %v2663, %v2661
    %v2810 = vpack.c.b16 %v2664, %v2662
    %v2811 = vpack.c.b16 %v2667, %v2665
    %v2812 = vpack.c.b16 %v2668, %v2666
    %v2813 = vpack.c.b16 %v2671, %v2669
    %v2814 = vpack.c.b16 %v2672, %v2670
    %v2815 = vpack.c.b16 %v2675, %v2673
    %v2816 = vpack.c.b16 %v2676, %v2674
    %v2817 = vpack.c.b16 %v2679, %v2677
    %v2818 = vpack.c.b16 %v2680, %v2678
    %v2819 = vpack.c.b16 %v2683, %v2681
    %v2820 = vpack.c.b16 %v2684, %v2682
    %v2821 = vpack.c.b16 %v2687, %v2685
    %v2822 = vpack.c.b16 %v2688, %v2686
    %v2823 = vpack.c.b16 %v2691, %v2689
    %v2824 = vpack.c.b16 %v2692, %v2690
    %v2825 = vpack.c.b16 %v2695, %v2693
    %v2826 = vpack.c.b16 %v2696, %v2694
    %v2827 = vpack.c.b16 %v2699, %v2697
    %v2828 = vpack.c.b16 %v2700, %v2698
    %2957 = vmatprep.subr.bf16.mxu0 %v2702
    %2958 = vmatpush1.bf16.msra.mxu0 %v2701
    %2959 = vmatprep.subr.bf16.mxu0 %v2704
    %2960 = vmatpush1.bf16.msra.mxu0 %v2703
    %2961 = vmatprep.subr.bf16.mxu0 %v2706
    %2962 = vmatpush1.bf16.msra.mxu0 %v2705
    %2963 = vmatprep.subr.bf16.mxu0 %v2708
    %2964 = vmatpush1.bf16.msra.mxu0 %v2707
    %2965 = vmatprep.subr.bf16.mxu0 %v2710
    %2966 = vmatpush1.bf16.msra.mxu0 %v2709
    %2967 = vmatprep.subr.bf16.mxu0 %v2712
    %2968 = vmatpush1.bf16.msra.mxu0 %v2711
    %2969 = vmatprep.subr.bf16.mxu0 %v2714
    %2970 = vmatpush1.bf16.msra.mxu0 %v2713
    %2971 = vmatprep.subr.bf16.mxu0 %v2716
    %2972 = vmatpush1.bf16.msra.mxu0 %v2715
    %2973 = vmatprep.subr.bf16.mxu0 %v2718
    %2974 = vmatpush1.bf16.msra.mxu0 %v2717
    %2975 = vmatprep.subr.bf16.mxu0 %v2720
    %2976 = vmatpush1.bf16.msra.mxu0 %v2719
    %2977 = vmatprep.subr.bf16.mxu0 %v2722
    %2978 = vmatpush1.bf16.msra.mxu0 %v2721
    %2979 = vmatprep.subr.bf16.mxu0 %v2724
    %2980 = vmatpush1.bf16.msra.mxu0 %v2723
    %2981 = vmatprep.subr.bf16.mxu0 %v2726
    %2982 = vmatpush1.bf16.msra.mxu0 %v2725
    %2983 = vmatprep.subr.bf16.mxu0 %v2728
    %2984 = vmatpush1.bf16.msra.mxu0 %v2727
    %2985 = vmatprep.subr.bf16.mxu0 %v2730
    %2986 = vmatpush1.bf16.msra.mxu0 %v2729
    %2987 = vmatprep.subr.bf16.mxu0 %v2732
    %2988 = vmatpush1.bf16.msra.mxu0 %v2731
    %2989 = vmatprep.mubr.bf16.mxu0 %v2170
    %2990 = vmatmul.mubr.bf16.gmra.mrb[0].mxu0 %v2169
    %v2991 = vpop.f32.mrb[0].mxu0
    %v2992 = vadd.f32 %v2310, %v2991
    %v2993 = vpop.f32.mrb[0].mxu0
    %v2994 = vadd.f32 %v2314, %v2993
    %v2995 = vpop.f32.mrb[0].mxu0
    %v2996 = vpop.f32.mrb[0].mxu0
    %2997 = vdwg.mxu0
    %2998 = vmatprep.subr.bf16.mxu0 %v2734
    %2999 = vmatpush1.bf16.msra.mxu0 %v2733
    %3000 = vmatprep.subr.bf16.mxu0 %v2736
    %3001 = vmatpush1.bf16.msra.mxu0 %v2735
    %3002 = vmatprep.subr.bf16.mxu0 %v2738
    %3003 = vmatpush1.bf16.msra.mxu0 %v2737
    %3004 = vmatprep.subr.bf16.mxu0 %v2740
    %3005 = vmatpush1.bf16.msra.mxu0 %v2739
    %3006 = vmatprep.subr.bf16.mxu0 %v2742
    %3007 = vmatpush1.bf16.msra.mxu0 %v2741
    %3008 = vmatprep.subr.bf16.mxu0 %v2744
    %3009 = vmatpush1.bf16.msra.mxu0 %v2743
    %3010 = vmatprep.subr.bf16.mxu0 %v2746
    %3011 = vmatpush1.bf16.msra.mxu0 %v2745
    %3012 = vmatprep.subr.bf16.mxu0 %v2748
    %3013 = vmatpush1.bf16.msra.mxu0 %v2747
    %3014 = vmatprep.subr.bf16.mxu0 %v2750
    %3015 = vmatpush1.bf16.msra.mxu0 %v2749
    %3016 = vmatprep.subr.bf16.mxu0 %v2752
    %3017 = vmatpush1.bf16.msra.mxu0 %v2751
    %3018 = vmatprep.subr.bf16.mxu0 %v2754
    %3019 = vmatpush1.bf16.msra.mxu0 %v2753
    %3020 = vmatprep.subr.bf16.mxu0 %v2756
    %3021 = vmatpush1.bf16.msra.mxu0 %v2755
    %3022 = vmatprep.subr.bf16.mxu0 %v2758
    %3023 = vmatpush1.bf16.msra.mxu0 %v2757
    %3024 = vmatprep.subr.bf16.mxu0 %v2760
    %3025 = vmatpush1.bf16.msra.mxu0 %v2759
    %3026 = vmatprep.subr.bf16.mxu0 %v2762
    %3027 = vmatpush1.bf16.msra.mxu0 %v2761
    %3028 = vmatprep.subr.bf16.mxu0 %v2764
    %3029 = vmatpush1.bf16.msra.mxu0 %v2763
    %3030 = vmatprep.mubr.bf16.mxu0 %v2172
    %3031 = vmatmul.mubr.bf16.gmra.mrb[0].mxu0 %v2171
    %v3032 = vpop.f32.mrb[0].mxu0
    %v3033 = vadd.f32 %v2992, %v3032
    %v3034 = vpop.f32.mrb[0].mxu0
    %v3035 = vadd.f32 %v2994, %v3034
    %v3036 = vpop.f32.mrb[0].mxu0
    %v3037 = vpop.f32.mrb[0].mxu0
    %3038 = vdwg.mxu0
    %3039 = vmatprep.subr.bf16.mxu0 %v2766
    %3040 = vmatpush1.bf16.msra.mxu0 %v2765
    %3041 = vmatprep.subr.bf16.mxu0 %v2768
    %3042 = vmatpush1.bf16.msra.mxu0 %v2767
    %3043 = vmatprep.subr.bf16.mxu0 %v2770
    %3044 = vmatpush1.bf16.msra.mxu0 %v2769
    %3045 = vmatprep.subr.bf16.mxu0 %v2772
    %3046 = vmatpush1.bf16.msra.mxu0 %v2771
    %3047 = vmatprep.subr.bf16.mxu0 %v2774
    %3048 = vmatpush1.bf16.msra.mxu0 %v2773
    %3049 = vmatprep.subr.bf16.mxu0 %v2776
    %3050 = vmatpush1.bf16.msra.mxu0 %v2775
    %3051 = vmatprep.subr.bf16.mxu0 %v2778
    %3052 = vmatpush1.bf16.msra.mxu0 %v2777
    %3053 = vmatprep.subr.bf16.mxu0 %v2780
    %3054 = vmatpush1.bf16.msra.mxu0 %v2779
    %3055 = vmatprep.subr.bf16.mxu0 %v2782
    %3056 = vmatpush1.bf16.msra.mxu0 %v2781
    %3057 = vmatprep.subr.bf16.mxu0 %v2784
    %3058 = vmatpush1.bf16.msra.mxu0 %v2783
    %3059 = vmatprep.subr.bf16.mxu0 %v2786
    %3060 = vmatpush1.bf16.msra.mxu0 %v2785
    %3061 = vmatprep.subr.bf16.mxu0 %v2788
    %3062 = vmatpush1.bf16.msra.mxu0 %v2787
    %3063 = vmatprep.subr.bf16.mxu0 %v2790
    %3064 = vmatpush1.bf16.msra.mxu0 %v2789
    %3065 = vmatprep.subr.bf16.mxu0 %v2792
    %3066 = vmatpush1.bf16.msra.mxu0 %v2791
    %3067 = vmatprep.subr.bf16.mxu0 %v2794
    %3068 = vmatpush1.bf16.msra.mxu0 %v2793
    %3069 = vmatprep.subr.bf16.mxu0 %v2796
    %3070 = vmatpush1.bf16.msra.mxu0 %v2795
    %3071 = vmatprep.mubr.bf16.mxu0 %v2174
    %3072 = vmatmul.mubr.bf16.gmra.mrb[0].mxu0 %v2173
    %v3073 = vpop.f32.mrb[0].mxu0
    %v3074 = vadd.f32 %v3033, %v3073
    %v3075 = vpop.f32.mrb[0].mxu0
    %v3076 = vadd.f32 %v3035, %v3075
    %v3077 = vpop.f32.mrb[0].mxu0
    %v3078 = vpop.f32.mrb[0].mxu0
    %3079 = vdwg.mxu0
    %3080 = vmatprep.subr.bf16.mxu0 %v2798
    %3081 = vmatpush1.bf16.msra.mxu0 %v2797
    %3082 = vmatprep.subr.bf16.mxu0 %v2800
    %3083 = vmatpush1.bf16.msra.mxu0 %v2799
    %3084 = vmatprep.subr.bf16.mxu0 %v2802
    %3085 = vmatpush1.bf16.msra.mxu0 %v2801
    %3086 = vmatprep.subr.bf16.mxu0 %v2804
    %3087 = vmatpush1.bf16.msra.mxu0 %v2803
    %3088 = vmatprep.subr.bf16.mxu0 %v2806
    %3089 = vmatpush1.bf16.msra.mxu0 %v2805
    %3090 = vmatprep.subr.bf16.mxu0 %v2808
    %3091 = vmatpush1.bf16.msra.mxu0 %v2807
    %3092 = vmatprep.subr.bf16.mxu0 %v2810
    %3093 = vmatpush1.bf16.msra.mxu0 %v2809
    %3094 = vmatprep.subr.bf16.mxu0 %v2812
    %3095 = vmatpush1.bf16.msra.mxu0 %v2811
    %3096 = vmatprep.subr.bf16.mxu0 %v2814
    %3097 = vmatpush1.bf16.msra.mxu0 %v2813
    %3098 = vmatprep.subr.bf16.mxu0 %v2816
    %3099 = vmatpush1.bf16.msra.mxu0 %v2815
    %3100 = vmatprep.subr.bf16.mxu0 %v2818
    %3101 = vmatpush1.bf16.msra.mxu0 %v2817
    %3102 = vmatprep.subr.bf16.mxu0 %v2820
    %3103 = vmatpush1.bf16.msra.mxu0 %v2819
    %3104 = vmatprep.subr.bf16.mxu0 %v2822
    %3105 = vmatpush1.bf16.msra.mxu0 %v2821
    %3106 = vmatprep.subr.bf16.mxu0 %v2824
    %3107 = vmatpush1.bf16.msra.mxu0 %v2823
    %3108 = vmatprep.subr.bf16.mxu0 %v2826
    %3109 = vmatpush1.bf16.msra.mxu0 %v2825
    %3110 = vmatprep.subr.bf16.mxu0 %v2828
    %3111 = vmatpush1.bf16.msra.mxu0 %v2827
    %3112 = vmatprep.mubr.bf16.mxu0 %v2176
    %3113 = vmatmul.mubr.bf16.gmra.mrb[0].mxu0 %v2175
    %v3114 = vpop.f32.mrb[0].mxu0
    %v3115 = vadd.f32 %v3074, %v3114
    %v3116 = vpop.f32.mrb[0].mxu0
    %v3117 = vadd.f32 %v3076, %v3116
    %v3118 = vpop.f32.mrb[0].mxu0
    %v3119 = vpop.f32.mrb[0].mxu0
    %3120 = vdwg.mxu0
    %v3121 = vmax.f32 %v3115, 0.0
    %v3122 = vmax.f32 %v3117, 0.0
    %v3123 = vld [vmem:[%s7] sm:$0x3]
    %v3124 = vunpack.c.l.bf16 %v3123
    %v3126 = vlaneseq
    %v3127 = vshrl.u32 %v3126, 7
    %v3128 = vsub.s32 0, %v3127
    %v3129 = vrot.slane %v3124, %v3128
    %v3130 = vlaneseq
    %v3131 = vshrl.u32 %v3130, 7
    %v3132 = vsub.s32 2, %v3131
    %v3133 = vrot.slane %v3124, %v3132
    %v3136 = vlaneseq
    %v3137 = vshrl.u32 %v3136, 7
    %v3138 = vsub.s32 0, %v3137
    %v3139 = vrot.slane %v3129, %v3138
    %v3140 = vlaneseq
    %v3141 = vshrl.u32 %v3140, 7
    %v3142 = vsub.s32 0, %v3141
    %v3143 = vrot.slane %v3133, %v3142
    %v3144 = vmul.f32 %v3121, %v3139
    %v3145 = vmul.f32 %v3122, %v3143
    %v3146 = vadd.f32 %v3144, %v3145
    %3147 = vadd.xlane.f32.xlu0 %v3146
    %v3148 = vpop.xlane.xlu0 %3147
    %v3149 = vld [vmem:[#allocation2] sm:$0x1]
    %v3151 = vlaneseq
    %v3152 = vshrl.u32 %v3151, 7
    %v3153 = vsub.s32 0, %v3152
    %v3154 = vrot.slane %v3149, %v3153
    %v3156 = vadd.f32 %v3148, %v3154
    %v3157 = vtanh.pop %v3156
    %3159 = vset.pattern.permute.xlu0 0
    %3160 = vperm.xlu0 %3159, %v3157
    %v3161 = vpop.permute.xlu0 %3160
    %3163 = vst [vmem:[#allocation11] sm:$0xff] %v3161
    // Predicated region
    $region54: #{tpu_custom_call.1} parent=1 // pred_check
      _
    $region55: #{tpu_custom_call.1} parent=1 // pred_check_branch
      %3165 = sbr.rel (0) target = $region57
    $region56: #{tpu_custom_call.1} parent=1 // pred_region
      %s3167 = ssub.s32 128, 128
      %3168 = vsyncadd [#allocation5], %s3167
      %s3170 = sshll.u32 [#allocation11], 4
      %s3171 = int_to_ptr.vmem [resolvable:$true] %s3170
      %3173 = dma.vmem_to_hbm [thread:$0]  %s3171, 128, %s9, [#allocation5]
    $region57: #{tpu_custom_call.1} parent=1 // pred_fallthru
      _
    // Predicated region
    $region58: #{tpu_custom_call.1} parent=1 // pred_check
      _
    $region59: #{tpu_custom_call.1} parent=1 // pred_check_branch
      %3175 = sbr.rel (0) target = $region61
    $region60: #{tpu_custom_call.1} parent=1 // pred_region
      %3176 = dma.done [#allocation5], 128
    $region61: #{tpu_custom_call.1} parent=1 // pred_fallthru
      _
    %3177 = vsyncpa [#allocation4], 1
    %3178 = vsyncpa [#allocation7], 1
    %3179 = vsyncpa [#allocation10], 1
    %3180 = vsyncpa [#allocation5], 1

</llo_original>
